<compile_context>
chip_gen: v7x
topology: tpu7x:2x2x1
jax: 0.10.0
libtpu: 0.0.40
codegen_flags: <defaults>
</compile_context>

<pallas_src>
import jax
import jax.numpy as jnp
from jax.experimental import pallas as pl
from jax.experimental.pallas import tpu as pltpu


BN_EPS = 0.9          # nn.BatchNorm1d(N, 0.9): second positional arg is eps
LRELU_SLOPE = 0.2


def _round_up(x, m):
    return (x + m - 1) // m * m


def _leaky_relu(x):
    return jnp.where(x >= 0, x, LRELU_SLOPE * x)


def _batchnorm_train(x, gamma, beta):
    # Training-mode BatchNorm1d: full-batch statistics, biased variance, eps=0.9.
    mean = jnp.mean(x, axis=0, keepdims=True)
    var = jnp.mean((x - mean) * (x - mean), axis=0, keepdims=True)
    return gamma * (x - mean) * jax.lax.rsqrt(var + BN_EPS) + beta


# ----------------------------------------------------------------------------
# Kernel 1: layers 1-4 (needs the whole batch for BatchNorm -> no batch tiling)
# ----------------------------------------------------------------------------
def trunk_kernel(z_ref,
                 w1_ref, b1_ref,
                 w2_ref, b2_ref, g2_ref, be2_ref,
                 w3_ref, b3_ref, g3_ref, be3_ref,
                 w4_ref, b4_ref, g4_ref, be4_ref,
                 h_ref):
    z = z_ref[...]

    # Linear(latent, 128) + LeakyReLU(0.2)
    h = jnp.dot(z, w1_ref[...], preferred_element_type=jnp.float32) + b1_ref[...]
    h = _leaky_relu(h)

    # Linear(128, 256) + BatchNorm1d(256, eps=0.9) + LeakyReLU(0.2)
    h = jnp.dot(h, w2_ref[...], preferred_element_type=jnp.float32) + b2_ref[...]
    h = _leaky_relu(_batchnorm_train(h, g2_ref[...], be2_ref[...]))

    # Linear(256, 512) + BatchNorm1d(512, eps=0.9) + LeakyReLU(0.2)
    h = jnp.dot(h, w3_ref[...], preferred_element_type=jnp.float32) + b3_ref[...]
    h = _leaky_relu(_batchnorm_train(h, g3_ref[...], be3_ref[...]))

    # Linear(512, 1024) + BatchNorm1d(1024, eps=0.9) + LeakyReLU(0.2)
    h = jnp.dot(h, w4_ref[...], preferred_element_type=jnp.float32) + b4_ref[...]
    h = _leaky_relu(_batchnorm_train(h, g4_ref[...], be4_ref[...]))

    # Emit bf16 once here instead of re-casting in every head grid step.
    h_ref[...] = h.astype(h_ref.dtype)


# ----------------------------------------------------------------------------
# Kernel 2: Linear(1024, out_dim) + Tanh, column-tiled; w5 streamed as bf16
# ----------------------------------------------------------------------------
def head_kernel(h_ref, w5_ref, b5_ref, out_ref):
    # bf16 x bf16 -> f32 accumulation on the MXU.
    acc = jnp.dot(h_ref[...], w5_ref[...], preferred_element_type=jnp.float32)
    out_ref[...] = jnp.tanh(acc + b5_ref[...])


# ----------------------------------------------------------------------------
# Generation-aware tiling + one-time parameter preparation (hoisted copies)
# ----------------------------------------------------------------------------
def _tpu_vmem_bytes():
    try:
        return int(pltpu.get_tpu_info().vmem_capacity_bytes)
    except Exception:
        return 64 * 1024 * 1024   # conservative fallback == v7x per-TC VMEM


def _pick_head_tiling(out_dim, batch, *, tn=None, vmem_bytes=None):
    """Pick column tile (multiple of 128) and vmem_limit per TPU generation."""
    if vmem_bytes is None:
        vmem_bytes = _tpu_vmem_bytes()
    if vmem_bytes >= (96 << 20):        # v5e / v6e: 128 MiB physical VMEM
        vmem_limit = 96 << 20
        tn_pref = 16384
    else:                               # v7x: 64 MiB per TensorCore
        vmem_limit = 48 << 20
        tn_pref = 8192
    if tn is not None:
        tn_pref = int(tn)

    # Fit double-buffered w5 (bf16), out tile (f32), bias, plus resident h.
    h_bytes = batch * 1024 * 2
    per_col = 2 * (1024 * 2) + 2 * (batch * 4) + 2 * 4
    budget = int(0.85 * vmem_limit) - h_bytes
    tn_fit = max(128, (budget // per_col) // 128 * 128)

    tn_eff = min(tn_pref, tn_fit, _round_up(out_dim, 128))
    tn_eff = max(128, _round_up(tn_eff, 128))
    padded_out = _round_up(out_dim, tn_eff)
    return tn_eff, padded_out, vmem_limit


def prepare_params(params, latent_dim, out_dim, batch, *, tn=None, vmem_bytes=None):
    """One-time (per-model) preparation.  Hoists out of the forward pass:
       * zero-padding of the latent/contraction dim (100 -> 128) on w1,
       * the f32 -> bf16 cast of w5 and its column zero-pad to the tile grid.
    At the real img_shape this removes ~1.2 GB of per-call HBM copy traffic."""
    tn_eff, padded_out, vmem_limit = _pick_head_tiling(
        out_dim, batch, tn=tn, vmem_bytes=vmem_bytes)
    lat_pad = _round_up(latent_dim, 128)

    p = dict(params)

    w1 = params["w1"]
    if lat_pad != latent_dim:
        w1 = jnp.pad(w1, ((0, lat_pad - latent_dim), (0, 0)))   # zero rows -> exact
    p["w1p"] = w1

    w5 = params["w5"].astype(jnp.bfloat16)                      # halve HBM stream bytes
    b5 = params["b5"]
    if padded_out != out_dim:
        w5 = jnp.pad(w5, ((0, 0), (0, padded_out - out_dim)))
        b5 = jnp.pad(b5, ((0, 0), (0, padded_out - out_dim)))
    p["w5_bf16"] = w5
    p["b5p"] = b5

    meta = {
        "latent_dim": latent_dim,
        "lat_pad": lat_pad,
        "out_dim": out_dim,
        "tn_eff": tn_eff,
        "padded_out": padded_out,
        "vmem_limit": vmem_limit,
    }
    return p, meta


# ----------------------------------------------------------------------------
# Forward pass
# ----------------------------------------------------------------------------
def generator_forward(z, prepared, meta, img_shape):
    """z: (B, latent_dim) float32.  Returns (B, *img_shape) float32.
    NOTE: the head is HBM-bound on the w5 stream; throughput scales ~linearly
    with B at constant wall-clock, so batch as many z rows per call as possible."""
    B, latent = z.shape
    assert latent == meta["latent_dim"]
    out_dim = meta["out_dim"]
    lat_pad = meta["lat_pad"]
    tn_eff = meta["tn_eff"]
    padded_out = meta["padded_out"]

    # Only the (tiny, per-call) input z needs the lane-dense latent pad.
    if lat_pad != latent:
        z = jnp.pad(z, ((0, 0), (0, lat_pad - latent)))

    # --------------------------- trunk (layers 1-4) ---------------------------
    vmem = pl.BlockSpec(memory_space=pltpu.MemorySpace.VMEM)
    trunk_args = [
        z,
        prepared["w1p"], prepared["b1"],
        prepared["w2"], prepared["b2"], prepared["g2"], prepared["be2"],
        prepared["w3"], prepared["b3"], prepared["g3"], prepared["be3"],
        prepared["w4"], prepared["b4"], prepared["g4"], prepared["be4"],
    ]
    h = pl.pallas_call(
        trunk_kernel,
        out_shape=jax.ShapeDtypeStruct((B, 1024), jnp.bfloat16),
        in_specs=[vmem] * len(trunk_args),
        out_specs=vmem,
    )(*trunk_args)

    # ------------------------- head (layer 5 + tanh) --------------------------
    grid = (padded_out // tn_eff,)
    flat = pl.pallas_call(
        head_kernel,
        out_shape=jax.ShapeDtypeStruct((B, padded_out), jnp.float32),
        grid=grid,
        in_specs=[
            pl.BlockSpec((B, 1024), lambda j: (0, 0)),           # resident bf16 activation
            pl.BlockSpec((1024, tn_eff), lambda j: (0, j)),      # streamed bf16 weights
            pl.BlockSpec((1, tn_eff), lambda j: (0, j)),         # bias tile
        ],
        out_specs=pl.BlockSpec((B, tn_eff), lambda j: (0, j)),
        compiler_params=pltpu.CompilerParams(
            dimension_semantics=("parallel",),        # independent column tiles -> megacore
            vmem_limit_bytes=meta["vmem_limit"],      # generation-aware
        ),
    )(h, prepared["w5_bf16"], prepared["b5p"])

    # Glue: drop lane padding, NCHW reshape (matches img.view(B, *img_shape)).
    return flat[:, :out_dim].reshape(B, *img_shape)


# ----------------------------------------------------------------------------
# Parameters / references
# ----------------------------------------------------------------------------
def init_params(key, latent_dim, out_dim):
    """Deterministic synthetic parameters (PyTorch Linear shapes, stored transposed)."""
    dims = [latent_dim, 128, 256, 512, 1024, out_dim]
    keys = jax.random.split(key, 10)
    p = {}

    def lin(kw, kb, fan_in, fan_out):
        bound = 1.0 / jnp.sqrt(fan_in)
        w = jax.random.uniform(kw, (fan_in, fan_out), jnp.float32, -bound, bound)
        b = jax.random.uniform(kb, (1, fan_out), jnp.float32, -bound, bound)
        return w, b

    p["w1"], p["b1"] = lin(keys[0], keys[1], dims[0], dims[1])
    p["w2"], p["b2"] = lin(keys[2], keys[3], dims[1], dims[2])
    p["w3"], p["b3"] = lin(keys[4], keys[5], dims[2], dims[3])
    p["w4"], p["b4"] = lin(keys[6], keys[7], dims[3], dims[4])
    p["w5"], p["b5"] = lin(keys[8], keys[9], dims[4], dims[5])

    # BatchNorm affine params (PyTorch init: gamma=1, beta=0)
    for name, n in (("2", dims[2]), ("3", dims[3]), ("4", dims[4])):
        p["g" + name] = jnp.ones((1, n), jnp.float32)
        p["be" + name] = jnp.zeros((1, n), jnp.float32)
    return p


def reference_forward(z, params, img_shape, *, bf16_head=False):
    """Pure-JAX reference.  bf16_head=True mirrors the kernel's bf16 h / w5 stream."""
    h = _leaky_relu(z @ params["w1"] + params["b1"])
    h = _leaky_relu(_batchnorm_train(h @ params["w2"] + params["b2"],
                                     params["g2"], params["be2"]))
    h = _leaky_relu(_batchnorm_train(h @ params["w3"] + params["b3"],
                                     params["g3"], params["be3"]))
    h = _leaky_relu(_batchnorm_train(h @ params["w4"] + params["b4"],
                                     params["g4"], params["be4"]))
    w5 = params["w5"]
    if bf16_head:
        h = h.astype(jnp.bfloat16)
        w5 = w5.astype(jnp.bfloat16)
    out = jnp.tanh(jnp.dot(h, w5, preferred_element_type=jnp.float32) + params["b5"])
    return out.astype(jnp.float32).reshape(z.shape[0], *img_shape)


if __name__ == "__main__":
    # Small shapes consistent with the module: latent_dim=100 kept, image shrunk.
    latent_dim = 100
    img_shape = (3, 8, 8)          # scaled down from (3, 256, 256)
    batch = 8
    out_dim = img_shape[0] * img_shape[1] * img_shape[2]

    key = jax.random.PRNGKey(0)
    k_z, k_p = jax.random.split(key)
    z = jax.random.normal(k_z, (batch, latent_dim), jnp.float32)
    params = init_params(k_p, latent_dim, out_dim)

    # One-time prep (hoisted bf16 cast / padding).  tn=128 override so the toy
    # out_dim (192 -> padded 256) exercises a 2-step grid; at the real
    # img_shape tn is picked generation-aware (8192 on v7x, 16384 on v5e/v6e).
    prepared, meta = prepare_params(params, latent_dim, out_dim, batch, tn=128)

    img = generator_forward(z, prepared, meta, img_shape)
    img = jax.block_until_ready(img)
    assert img.shape == (batch, *img_shape)

    # Tight check vs a reference that matches the kernel's bf16 last layer.
    ref_bf16 = reference_forward(z, params, img_shape, bf16_head=True)
    assert jnp.allclose(img, ref_bf16, atol=1e-3, rtol=1e-3), "mismatch vs bf16 reference"

    # Sanity check vs the exact f32 PyTorch semantics (bf16 weight stream only
    # perturbs the pre-tanh logits by ~1e-3).
    ref_f32 = reference_forward(z, params, img_shape, bf16_head=False)
    assert jnp.allclose(img, ref_f32, atol=3e-2, rtol=0.0), "mismatch vs f32 reference"

    print("KERNEL_OK")
</pallas_src>

<mosaic_0001>
module attributes {stable_mosaic.version = 11 : i64} {
  func.func @trunk_kernel(%arg0: memref<8x128xf32, #tpu.memory_space<vmem>>, %arg1: memref<128x128xf32, #tpu.memory_space<vmem>>, %arg2: memref<1x128xf32, #tpu.memory_space<vmem>>, %arg3: memref<128x256xf32, #tpu.memory_space<vmem>>, %arg4: memref<1x256xf32, #tpu.memory_space<vmem>>, %arg5: memref<1x256xf32, #tpu.memory_space<vmem>>, %arg6: memref<1x256xf32, #tpu.memory_space<vmem>>, %arg7: memref<256x512xf32, #tpu.memory_space<vmem>>, %arg8: memref<1x512xf32, #tpu.memory_space<vmem>>, %arg9: memref<1x512xf32, #tpu.memory_space<vmem>>, %arg10: memref<1x512xf32, #tpu.memory_space<vmem>>, %arg11: memref<512x1024xf32, #tpu.memory_space<vmem>>, %arg12: memref<1x1024xf32, #tpu.memory_space<vmem>>, %arg13: memref<1x1024xf32, #tpu.memory_space<vmem>>, %arg14: memref<1x1024xf32, #tpu.memory_space<vmem>>, %arg15: memref<8x1024xbf16, #tpu.memory_space<vmem>>) attributes {dimension_semantics = [], scalar_prefetch = 0 : i64, scratch_operands = 0 : i64, tpu.core_type = #tpu.core_type<tc>} {
    %c0 = arith.constant 0 : index
    %c0_0 = arith.constant 0 : index
    %0 = vector.load %arg0[%c0, %c0_0] : memref<8x128xf32, #tpu.memory_space<vmem>>, vector<8x128xf32>
    %c0_1 = arith.constant 0 : index
    %c0_2 = arith.constant 0 : index
    %1 = vector.load %arg1[%c0_1, %c0_2] : memref<128x128xf32, #tpu.memory_space<vmem>>, vector<128x128xf32>
    %cst = arith.constant dense<0.000000e+00> : vector<8x128xf32>
    %2 = tpu.matmul %0, %1, %cst {dimension_numbers = #tpu.dot_dimension_numbers<[1], [0], [0], [1], [0, 0, 1, 1], [], []>} : vector<8x128xf32>, vector<128x128xf32>, vector<8x128xf32> -> vector<8x128xf32>
    %c0_3 = arith.constant 0 : index
    %c0_4 = arith.constant 0 : index
    %3 = vector.load %arg2[%c0_3, %c0_4] : memref<1x128xf32, #tpu.memory_space<vmem>>, vector<1x128xf32>
    %4 = vector.broadcast %3 : vector<1x128xf32> to vector<8x128xf32>
    %5 = arith.addf %2, %4 : vector<8x128xf32>
    %cst_5 = arith.constant 0.000000e+00 : f32
    %6 = vector.broadcast %cst_5 : f32 to vector<8x128xf32>
    %7 = arith.cmpf oge, %5, %6 : vector<8x128xf32>
    %cst_6 = arith.constant 2.000000e-01 : f32
    %8 = vector.broadcast %cst_6 : f32 to vector<8x128xf32>
    %9 = arith.mulf %8, %5 : vector<8x128xf32>
    %10 = arith.select %7, %5, %9 : vector<8x128xi1>, vector<8x128xf32>
    %c0_7 = arith.constant 0 : index
    %c0_8 = arith.constant 0 : index
    %11 = vector.load %arg3[%c0_7, %c0_8] : memref<128x256xf32, #tpu.memory_space<vmem>>, vector<128x256xf32>
    %cst_9 = arith.constant dense<0.000000e+00> : vector<8x256xf32>
    %12 = tpu.matmul %10, %11, %cst_9 {dimension_numbers = #tpu.dot_dimension_numbers<[1], [0], [0], [1], [0, 0, 1, 1], [], []>} : vector<8x128xf32>, vector<128x256xf32>, vector<8x256xf32> -> vector<8x256xf32>
    %c0_10 = arith.constant 0 : index
    %c0_11 = arith.constant 0 : index
    %13 = vector.load %arg4[%c0_10, %c0_11] : memref<1x256xf32, #tpu.memory_space<vmem>>, vector<1x256xf32>
    %14 = vector.broadcast %13 : vector<1x256xf32> to vector<8x256xf32>
    %15 = arith.addf %12, %14 : vector<8x256xf32>
    %c0_12 = arith.constant 0 : index
    %c0_13 = arith.constant 0 : index
    %16 = vector.load %arg5[%c0_12, %c0_13] : memref<1x256xf32, #tpu.memory_space<vmem>>, vector<1x256xf32>
    %c0_14 = arith.constant 0 : index
    %c0_15 = arith.constant 0 : index
    %17 = vector.load %arg6[%c0_14, %c0_15] : memref<1x256xf32, #tpu.memory_space<vmem>>, vector<1x256xf32>
    %cst_16 = arith.constant dense<0.000000e+00> : vector<256xf32>
    %18 = vector.multi_reduction <add>, %15, %cst_16 [0] : vector<8x256xf32> to vector<256xf32>
    %19 = vector.shape_cast %18 : vector<256xf32> to vector<1x256xf32>
    %cst_17 = arith.constant 8.000000e+00 : f32
    %20 = vector.broadcast %cst_17 : f32 to vector<1x256xf32>
    %21 = arith.divf %19, %20 : vector<1x256xf32>
    %22 = vector.broadcast %21 : vector<1x256xf32> to vector<8x256xf32>
    %23 = arith.subf %15, %22 : vector<8x256xf32>
    %24 = vector.broadcast %21 : vector<1x256xf32> to vector<8x256xf32>
    %25 = arith.subf %15, %24 : vector<8x256xf32>
    %26 = arith.mulf %23, %25 : vector<8x256xf32>
    %cst_18 = arith.constant dense<0.000000e+00> : vector<256xf32>
    %27 = vector.multi_reduction <add>, %26, %cst_18 [0] : vector<8x256xf32> to vector<256xf32>
    %28 = vector.shape_cast %27 : vector<256xf32> to vector<1x256xf32>
    %cst_19 = arith.constant 8.000000e+00 : f32
    %29 = vector.broadcast %cst_19 : f32 to vector<1x256xf32>
    %30 = arith.divf %28, %29 : vector<1x256xf32>
    %31 = vector.broadcast %21 : vector<1x256xf32> to vector<8x256xf32>
    %32 = arith.subf %15, %31 : vector<8x256xf32>
    %33 = vector.broadcast %16 : vector<1x256xf32> to vector<8x256xf32>
    %34 = arith.mulf %33, %32 : vector<8x256xf32>
    %cst_20 = arith.constant 0.899999976 : f32
    %35 = vector.broadcast %cst_20 : f32 to vector<1x256xf32>
    %36 = arith.addf %30, %35 : vector<1x256xf32>
    %37 = math.rsqrt %36 : vector<1x256xf32>
    %38 = vector.broadcast %37 : vector<1x256xf32> to vector<8x256xf32>
    %39 = arith.mulf %34, %38 : vector<8x256xf32>
    %40 = vector.broadcast %17 : vector<1x256xf32> to vector<8x256xf32>
    %41 = arith.addf %39, %40 : vector<8x256xf32>
    %cst_21 = arith.constant 0.000000e+00 : f32
    %42 = vector.broadcast %cst_21 : f32 to vector<8x256xf32>
    %43 = arith.cmpf oge, %41, %42 : vector<8x256xf32>
    %cst_22 = arith.constant 2.000000e-01 : f32
    %44 = vector.broadcast %cst_22 : f32 to vector<8x256xf32>
    %45 = arith.mulf %44, %41 : vector<8x256xf32>
    %46 = arith.select %43, %41, %45 : vector<8x256xi1>, vector<8x256xf32>
    %c0_23 = arith.constant 0 : index
    %c0_24 = arith.constant 0 : index
    %47 = vector.load %arg7[%c0_23, %c0_24] : memref<256x512xf32, #tpu.memory_space<vmem>>, vector<256x512xf32>
    %cst_25 = arith.constant dense<0.000000e+00> : vector<8x512xf32>
    %48 = tpu.matmul %46, %47, %cst_25 {dimension_numbers = #tpu.dot_dimension_numbers<[1], [0], [0], [1], [0, 0, 1, 1], [], []>} : vector<8x256xf32>, vector<256x512xf32>, vector<8x512xf32> -> vector<8x512xf32>
    %c0_26 = arith.constant 0 : index
    %c0_27 = arith.constant 0 : index
    %49 = vector.load %arg8[%c0_26, %c0_27] : memref<1x512xf32, #tpu.memory_space<vmem>>, vector<1x512xf32>
    %50 = vector.broadcast %49 : vector<1x512xf32> to vector<8x512xf32>
    %51 = arith.addf %48, %50 : vector<8x512xf32>
    %c0_28 = arith.constant 0 : index
    %c0_29 = arith.constant 0 : index
    %52 = vector.load %arg9[%c0_28, %c0_29] : memref<1x512xf32, #tpu.memory_space<vmem>>, vector<1x512xf32>
    %c0_30 = arith.constant 0 : index
    %c0_31 = arith.constant 0 : index
    %53 = vector.load %arg10[%c0_30, %c0_31] : memref<1x512xf32, #tpu.memory_space<vmem>>, vector<1x512xf32>
    %cst_32 = arith.constant dense<0.000000e+00> : vector<512xf32>
    %54 = vector.multi_reduction <add>, %51, %cst_32 [0] : vector<8x512xf32> to vector<512xf32>
    %55 = vector.shape_cast %54 : vector<512xf32> to vector<1x512xf32>
    %cst_33 = arith.constant 8.000000e+00 : f32
    %56 = vector.broadcast %cst_33 : f32 to vector<1x512xf32>
    %57 = arith.divf %55, %56 : vector<1x512xf32>
    %58 = vector.broadcast %57 : vector<1x512xf32> to vector<8x512xf32>
    %59 = arith.subf %51, %58 : vector<8x512xf32>
    %60 = vector.broadcast %57 : vector<1x512xf32> to vector<8x512xf32>
    %61 = arith.subf %51, %60 : vector<8x512xf32>
    %62 = arith.mulf %59, %61 : vector<8x512xf32>
    %cst_34 = arith.constant dense<0.000000e+00> : vector<512xf32>
    %63 = vector.multi_reduction <add>, %62, %cst_34 [0] : vector<8x512xf32> to vector<512xf32>
    %64 = vector.shape_cast %63 : vector<512xf32> to vector<1x512xf32>
    %cst_35 = arith.constant 8.000000e+00 : f32
    %65 = vector.broadcast %cst_35 : f32 to vector<1x512xf32>
    %66 = arith.divf %64, %65 : vector<1x512xf32>
    %67 = vector.broadcast %57 : vector<1x512xf32> to vector<8x512xf32>
    %68 = arith.subf %51, %67 : vector<8x512xf32>
    %69 = vector.broadcast %52 : vector<1x512xf32> to vector<8x512xf32>
    %70 = arith.mulf %69, %68 : vector<8x512xf32>
    %cst_36 = arith.constant 0.899999976 : f32
    %71 = vector.broadcast %cst_36 : f32 to vector<1x512xf32>
    %72 = arith.addf %66, %71 : vector<1x512xf32>
    %73 = math.rsqrt %72 : vector<1x512xf32>
    %74 = vector.broadcast %73 : vector<1x512xf32> to vector<8x512xf32>
    %75 = arith.mulf %70, %74 : vector<8x512xf32>
    %76 = vector.broadcast %53 : vector<1x512xf32> to vector<8x512xf32>
    %77 = arith.addf %75, %76 : vector<8x512xf32>
    %cst_37 = arith.constant 0.000000e+00 : f32
    %78 = vector.broadcast %cst_37 : f32 to vector<8x512xf32>
    %79 = arith.cmpf oge, %77, %78 : vector<8x512xf32>
    %cst_38 = arith.constant 2.000000e-01 : f32
    %80 = vector.broadcast %cst_38 : f32 to vector<8x512xf32>
    %81 = arith.mulf %80, %77 : vector<8x512xf32>
    %82 = arith.select %79, %77, %81 : vector<8x512xi1>, vector<8x512xf32>
    %c0_39 = arith.constant 0 : index
    %c0_40 = arith.constant 0 : index
    %83 = vector.load %arg11[%c0_39, %c0_40] : memref<512x1024xf32, #tpu.memory_space<vmem>>, vector<512x1024xf32>
    %cst_41 = arith.constant dense<0.000000e+00> : vector<8x1024xf32>
    %84 = tpu.matmul %82, %83, %cst_41 {dimension_numbers = #tpu.dot_dimension_numbers<[1], [0], [0], [1], [0, 0, 1, 1], [], []>} : vector<8x512xf32>, vector<512x1024xf32>, vector<8x1024xf32> -> vector<8x1024xf32>
    %c0_42 = arith.constant 0 : index
    %c0_43 = arith.constant 0 : index
    %85 = vector.load %arg12[%c0_42, %c0_43] : memref<1x1024xf32, #tpu.memory_space<vmem>>, vector<1x1024xf32>
    %86 = vector.broadcast %85 : vector<1x1024xf32> to vector<8x1024xf32>
    %87 = arith.addf %84, %86 : vector<8x1024xf32>
    %c0_44 = arith.constant 0 : index
    %c0_45 = arith.constant 0 : index
    %88 = vector.load %arg13[%c0_44, %c0_45] : memref<1x1024xf32, #tpu.memory_space<vmem>>, vector<1x1024xf32>
    %c0_46 = arith.constant 0 : index
    %c0_47 = arith.constant 0 : index
    %89 = vector.load %arg14[%c0_46, %c0_47] : memref<1x1024xf32, #tpu.memory_space<vmem>>, vector<1x1024xf32>
    %cst_48 = arith.constant dense<0.000000e+00> : vector<1024xf32>
    %90 = vector.multi_reduction <add>, %87, %cst_48 [0] : vector<8x1024xf32> to vector<1024xf32>
    %91 = vector.shape_cast %90 : vector<1024xf32> to vector<1x1024xf32>
    %cst_49 = arith.constant 8.000000e+00 : f32
    %92 = vector.broadcast %cst_49 : f32 to vector<1x1024xf32>
    %93 = arith.divf %91, %92 : vector<1x1024xf32>
    %94 = vector.broadcast %93 : vector<1x1024xf32> to vector<8x1024xf32>
    %95 = arith.subf %87, %94 : vector<8x1024xf32>
    %96 = vector.broadcast %93 : vector<1x1024xf32> to vector<8x1024xf32>
    %97 = arith.subf %87, %96 : vector<8x1024xf32>
    %98 = arith.mulf %95, %97 : vector<8x1024xf32>
    %cst_50 = arith.constant dense<0.000000e+00> : vector<1024xf32>
    %99 = vector.multi_reduction <add>, %98, %cst_50 [0] : vector<8x1024xf32> to vector<1024xf32>
    %100 = vector.shape_cast %99 : vector<1024xf32> to vector<1x1024xf32>
    %cst_51 = arith.constant 8.000000e+00 : f32
    %101 = vector.broadcast %cst_51 : f32 to vector<1x1024xf32>
    %102 = arith.divf %100, %101 : vector<1x1024xf32>
    %103 = vector.broadcast %93 : vector<1x1024xf32> to vector<8x1024xf32>
    %104 = arith.subf %87, %103 : vector<8x1024xf32>
    %105 = vector.broadcast %88 : vector<1x1024xf32> to vector<8x1024xf32>
    %106 = arith.mulf %105, %104 : vector<8x1024xf32>
    %cst_52 = arith.constant 0.899999976 : f32
    %107 = vector.broadcast %cst_52 : f32 to vector<1x1024xf32>
    %108 = arith.addf %102, %107 : vector<1x1024xf32>
    %109 = math.rsqrt %108 : vector<1x1024xf32>
    %110 = vector.broadcast %109 : vector<1x1024xf32> to vector<8x1024xf32>
    %111 = arith.mulf %106, %110 : vector<8x1024xf32>
    %112 = vector.broadcast %89 : vector<1x1024xf32> to vector<8x1024xf32>
    %113 = arith.addf %111, %112 : vector<8x1024xf32>
    %cst_53 = arith.constant 0.000000e+00 : f32
    %114 = vector.broadcast %cst_53 : f32 to vector<8x1024xf32>
    %115 = arith.cmpf oge, %113, %114 : vector<8x1024xf32>
    %cst_54 = arith.constant 2.000000e-01 : f32
    %116 = vector.broadcast %cst_54 : f32 to vector<8x1024xf32>
    %117 = arith.mulf %116, %113 : vector<8x1024xf32>
    %118 = arith.select %115, %113, %117 : vector<8x1024xi1>, vector<8x1024xf32>
    %119 = arith.truncf %118 : vector<8x1024xf32> to vector<8x1024xbf16>
    %c0_55 = arith.constant 0 : index
    %c0_56 = arith.constant 0 : index
    %120 = vector.load %arg15[%c0_55, %c0_56] : memref<8x1024xbf16, #tpu.memory_space<vmem>>, vector<8x1024xbf16>
    tpu.vector_store %arg15[%c0_55, %c0_56], %119 {strides = array<i32>} : memref<8x1024xbf16, #tpu.memory_space<vmem>>, vector<8x1024xbf16>,
    return
  }
}

</mosaic_0001>

<llo_original>
// kernel: tpu_custom_call.1
$region0: #{tpu_custom_call.1}
  #allocation0 [shape = 'u32[]', space=smem, size = 0x4, offset = 0x4, fixed_abs, tag = 'smem constant byte address 0x4 - core index']
  #allocation1 [shape = 'u32[144,128]{1,0:T(1,128)}', space=vmem, size = 0x12000, scoped, tag = 'internal scratch']
  %s0 = inlined_call_operand.hbm [shape: f32[8,128], index: 0, kind: input, shape index: {}]
  %s1 = inlined_call_operand.hbm [shape: f32[128,128], index: 1, kind: input, shape index: {}]
  %s2 = inlined_call_operand.hbm [shape: f32[1,128], index: 2, kind: input, shape index: {}]
  %s3 = inlined_call_operand.hbm [shape: f32[128,256], index: 3, kind: input, shape index: {}]
  %s4 = inlined_call_operand.hbm [shape: f32[1,256], index: 4, kind: input, shape index: {}]
  %s5 = inlined_call_operand.hbm [shape: f32[1,256], index: 5, kind: input, shape index: {}]
  %s6 = inlined_call_operand.hbm [shape: f32[1,256], index: 6, kind: input, shape index: {}]
  %s7 = inlined_call_operand.hbm [shape: f32[256,512], index: 7, kind: input, shape index: {}]
  %s8 = inlined_call_operand.hbm [shape: f32[1,512], index: 8, kind: input, shape index: {}]
  %s9 = inlined_call_operand.hbm [shape: f32[1,512], index: 9, kind: input, shape index: {}]
  %s10 = inlined_call_operand.hbm [shape: f32[1,512], index: 10, kind: input, shape index: {}]
  %s11 = inlined_call_operand.hbm [shape: f32[512,1024], index: 11, kind: input, shape index: {}]
  %s12 = inlined_call_operand.hbm [shape: f32[1,1024], index: 12, kind: input, shape index: {}]
  %s13 = inlined_call_operand.hbm [shape: f32[1,1024], index: 13, kind: input, shape index: {}]
  %s14 = inlined_call_operand.hbm [shape: f32[1,1024], index: 14, kind: input, shape index: {}]
  %s15 = inlined_call_operand.hbm [shape: bf16[8,1024], index: 15, kind: output, shape index: {}]
  %s16 = sld [smem:[#allocation0]]
  $region130: #{tpu_custom_call.1} parent=0
    _
  %s18 = ssub.s32 1, %s16
  %s19 = scalar_select 0, %s18, %s16
  $region1: #{tpu_custom_call.1} parent=0
    #allocation2 [shape = 'u8[4096]{0}', space=vmem, size = 0x1000, scoped, tag = 'input window, operand 0, single buffered']
    #allocation3 [shape = 's32[1]{0}', space=sflag, size = 0x4, scoped, tag = 'scoped memory for tpu_custom_call.1']
    #allocation4 [shape = 's32[1]{0}', space=sflag, size = 0x4, scoped, tag = 'scoped memory for tpu_custom_call.1']
    #allocation5 [shape = 'u8[65536]{0}', space=vmem, size = 0x10000, scoped, tag = 'input window, operand 1, single buffered']
    #allocation6 [shape = 's32[1]{0}', space=sflag, size = 0x4, scoped, tag = 'scoped memory for tpu_custom_call.1']
    #allocation7 [shape = 'u8[512]{0}', space=vmem, size = 0x400, scoped, tag = 'input window, operand 2, single buffered']
    #allocation8 [shape = 'u8[131072]{0}', space=vmem, size = 0x20000, scoped, tag = 'input window, operand 3, single buffered']
    #allocation9 [shape = 's32[1]{0}', space=sflag, size = 0x4, scoped, tag = 'scoped memory for tpu_custom_call.1']
    #allocation10 [shape = 'u8[1024]{0}', space=vmem, size = 0x400, scoped, tag = 'input window, operand 4, single buffered']
    #allocation11 [shape = 'u8[1024]{0}', space=vmem, size = 0x400, scoped, tag = 'input window, operand 5, single buffered']
    #allocation12 [shape = 's32[1]{0}', space=sflag, size = 0x4, scoped, tag = 'scoped memory for tpu_custom_call.1']
    #allocation13 [shape = 'u8[1024]{0}', space=vmem, size = 0x400, scoped, tag = 'input window, operand 6, single buffered']
    #allocation14 [shape = 'u8[524288]{0}', space=vmem, size = 0x80000, scoped, tag = 'input window, operand 7, single buffered']
    #allocation15 [shape = 's32[1]{0}', space=sflag, size = 0x4, scoped, tag = 'scoped memory for tpu_custom_call.1']
    #allocation16 [shape = 'u8[2048]{0}', space=vmem, size = 0x800, scoped, tag = 'input window, operand 8, single buffered']
    #allocation17 [shape = 'u8[2048]{0}', space=vmem, size = 0x800, scoped, tag = 'input window, operand 9, single buffered']
    #allocation18 [shape = 's32[1]{0}', space=sflag, size = 0x4, scoped, tag = 'scoped memory for tpu_custom_call.1']
    #allocation19 [shape = 'u8[2048]{0}', space=vmem, size = 0x800, scoped, tag = 'input window, operand 10, single buffered']
    #allocation20 [shape = 'u8[2097152]{0}', space=vmem, size = 0x200000, scoped, tag = 'input window, operand 11, single buffered']
    #allocation21 [shape = 's32[1]{0}', space=sflag, size = 0x4, scoped, tag = 'scoped memory for tpu_custom_call.1']
    #allocation22 [shape = 'u8[4096]{0}', space=vmem, size = 0x1000, scoped, tag = 'input window, operand 12, single buffered']
    #allocation23 [shape = 'u8[4096]{0}', space=vmem, size = 0x1000, scoped, tag = 'input window, operand 13, single buffered']
    #allocation24 [shape = 's32[1]{0}', space=sflag, size = 0x4, scoped, tag = 'scoped memory for tpu_custom_call.1']
    #allocation25 [shape = 'u8[4096]{0}', space=vmem, size = 0x1000, scoped, tag = 'input window, operand 14, single buffered']
    #allocation26 [shape = 'u8[16384]{0}', space=vmem, size = 0x4000, scoped, tag = 'output window, operand 0, single buffered']
    %20 = vsyncpa [#allocation3], 0
    %21 = vsyncpa [#allocation6], 0
    %22 = vsyncpa [#allocation9], 0
    %23 = vsyncpa [#allocation12], 0
    %24 = vsyncpa [#allocation15], 0
    %25 = vsyncpa [#allocation18], 0
    %26 = vsyncpa [#allocation21], 0
    %27 = vsyncpa [#allocation24], 0
    %28 = vsyncpa [#allocation4], 0
    // Predicated region
    $region2: #{tpu_custom_call.1} parent=1 // pred_check
      _
    $region3: #{tpu_custom_call.1} parent=1 // pred_check_branch
      %30 = sbr.rel (0) target = $region5
    $region4: #{tpu_custom_call.1} parent=1 // pred_region
      %s32 = ssub.s32 128, 128
      %33 = vsyncadd [#allocation3], %s32
      %s35 = sshll.u32 [#allocation2], 4
      %s36 = int_to_ptr.vmem [resolvable:$true] %s35
      %38 = dma.hbm_to_vmem [thread:$0]  %s0, 128, %s36, [#allocation3]
    $region5: #{tpu_custom_call.1} parent=1 // pred_fallthru
      _
    // Predicated region
    $region6: #{tpu_custom_call.1} parent=1 // pred_check
      _
    $region7: #{tpu_custom_call.1} parent=1 // pred_check_branch
      %40 = sbr.rel (0) target = $region9
    $region8: #{tpu_custom_call.1} parent=1 // pred_region
      %s42 = ssub.s32 2048, 2048
      %43 = vsyncadd [#allocation6], %s42
      %s44 = sshll.u32 [#allocation5], 4
      %s45 = int_to_ptr.vmem [resolvable:$true] %s44
      %50 = dma.hbm_to_vmem [thread:$0]  %s1, 2048, %s45, [#allocation6], 128, 128, 8
    $region9: #{tpu_custom_call.1} parent=1 // pred_fallthru
      _
    // Predicated region
    $region10: #{tpu_custom_call.1} parent=1 // pred_check
      _
    $region11: #{tpu_custom_call.1} parent=1 // pred_check_branch
      %52 = sbr.rel (0) target = $region13
    $region12: #{tpu_custom_call.1} parent=1 // pred_region
      %s54 = ssub.s32 16, 16
      %55 = vsyncadd [#allocation6], %s54
      %s57 = sshll.u32 [#allocation7], 4
      %s58 = int_to_ptr.vmem [resolvable:$true] %s57
      %60 = dma.hbm_to_vmem [thread:$0]  %s2, 16, %s58, [#allocation6]
    $region13: #{tpu_custom_call.1} parent=1 // pred_fallthru
      _
    // Predicated region
    $region14: #{tpu_custom_call.1} parent=1 // pred_check
      _
    $region15: #{tpu_custom_call.1} parent=1 // pred_check_branch
      %62 = sbr.rel (0) target = $region17
    $region16: #{tpu_custom_call.1} parent=1 // pred_region
      %s64 = ssub.s32 4096, 4096
      %65 = vsyncadd [#allocation9], %s64
      %s66 = sshll.u32 [#allocation8], 4
      %s67 = int_to_ptr.vmem [resolvable:$true] %s66
      %72 = dma.hbm_to_vmem [thread:$0]  %s3, 4096, %s67, [#allocation9], 256, 256, 16
    $region17: #{tpu_custom_call.1} parent=1 // pred_fallthru
      _
    // Predicated region
    $region18: #{tpu_custom_call.1} parent=1 // pred_check
      _
    $region19: #{tpu_custom_call.1} parent=1 // pred_check_branch
      %74 = sbr.rel (0) target = $region21
    $region20: #{tpu_custom_call.1} parent=1 // pred_region
      %s76 = ssub.s32 32, 32
      %77 = vsyncadd [#allocation9], %s76
      %s79 = sshll.u32 [#allocation10], 4
      %s80 = int_to_ptr.vmem [resolvable:$true] %s79
      %82 = dma.hbm_to_vmem [thread:$0]  %s4, 32, %s80, [#allocation9]
    $region21: #{tpu_custom_call.1} parent=1 // pred_fallthru
      _
    // Predicated region
    $region22: #{tpu_custom_call.1} parent=1 // pred_check
      _
    $region23: #{tpu_custom_call.1} parent=1 // pred_check_branch
      %84 = sbr.rel (0) target = $region25
    $region24: #{tpu_custom_call.1} parent=1 // pred_region
      %s86 = ssub.s32 32, 32
      %87 = vsyncadd [#allocation12], %s86
      %s89 = sshll.u32 [#allocation11], 4
      %s90 = int_to_ptr.vmem [resolvable:$true] %s89
      %92 = dma.hbm_to_vmem [thread:$0]  %s5, 32, %s90, [#allocation12]
    $region25: #{tpu_custom_call.1} parent=1 // pred_fallthru
      _
    // Predicated region
    $region26: #{tpu_custom_call.1} parent=1 // pred_check
      _
    $region27: #{tpu_custom_call.1} parent=1 // pred_check_branch
      %94 = sbr.rel (0) target = $region29
    $region28: #{tpu_custom_call.1} parent=1 // pred_region
      %s96 = ssub.s32 32, 32
      %97 = vsyncadd [#allocation12], %s96
      %s99 = sshll.u32 [#allocation13], 4
      %s100 = int_to_ptr.vmem [resolvable:$true] %s99
      %102 = dma.hbm_to_vmem [thread:$0]  %s6, 32, %s100, [#allocation12]
    $region29: #{tpu_custom_call.1} parent=1 // pred_fallthru
      _
    // Predicated region
    $region30: #{tpu_custom_call.1} parent=1 // pred_check
      _
    $region31: #{tpu_custom_call.1} parent=1 // pred_check_branch
      %104 = sbr.rel (0) target = $region33
    $region32: #{tpu_custom_call.1} parent=1 // pred_region
      %s106 = ssub.s32 16384, 16384
      %107 = vsyncadd [#allocation15], %s106
      %s108 = sshll.u32 [#allocation14], 4
      %s109 = int_to_ptr.vmem [resolvable:$true] %s108
      %114 = dma.hbm_to_vmem [thread:$0]  %s7, 16384, %s109, [#allocation15], 512, 512, 32
    $region33: #{tpu_custom_call.1} parent=1 // pred_fallthru
      _
    // Predicated region
    $region34: #{tpu_custom_call.1} parent=1 // pred_check
      _
    $region35: #{tpu_custom_call.1} parent=1 // pred_check_branch
      %116 = sbr.rel (0) target = $region37
    $region36: #{tpu_custom_call.1} parent=1 // pred_region
      %s118 = ssub.s32 64, 64
      %119 = vsyncadd [#allocation15], %s118
      %s121 = sshll.u32 [#allocation16], 4
      %s122 = int_to_ptr.vmem [resolvable:$true] %s121
      %124 = dma.hbm_to_vmem [thread:$0]  %s8, 64, %s122, [#allocation15]
    $region37: #{tpu_custom_call.1} parent=1 // pred_fallthru
      _
    // Predicated region
    $region38: #{tpu_custom_call.1} parent=1 // pred_check
      _
    $region39: #{tpu_custom_call.1} parent=1 // pred_check_branch
      %126 = sbr.rel (0) target = $region41
    $region40: #{tpu_custom_call.1} parent=1 // pred_region
      %s128 = ssub.s32 64, 64
      %129 = vsyncadd [#allocation18], %s128
      %s131 = sshll.u32 [#allocation17], 4
      %s132 = int_to_ptr.vmem [resolvable:$true] %s131
      %134 = dma.hbm_to_vmem [thread:$0]  %s9, 64, %s132, [#allocation18]
    $region41: #{tpu_custom_call.1} parent=1 // pred_fallthru
      _
    // Predicated region
    $region42: #{tpu_custom_call.1} parent=1 // pred_check
      _
    $region43: #{tpu_custom_call.1} parent=1 // pred_check_branch
      %136 = sbr.rel (0) target = $region45
    $region44: #{tpu_custom_call.1} parent=1 // pred_region
      %s138 = ssub.s32 64, 64
      %139 = vsyncadd [#allocation18], %s138
      %s141 = sshll.u32 [#allocation19], 4
      %s142 = int_to_ptr.vmem [resolvable:$true] %s141
      %144 = dma.hbm_to_vmem [thread:$0]  %s10, 64, %s142, [#allocation18]
    $region45: #{tpu_custom_call.1} parent=1 // pred_fallthru
      _
    // Predicated region
    $region46: #{tpu_custom_call.1} parent=1 // pred_check
      _
    $region47: #{tpu_custom_call.1} parent=1 // pred_check_branch
      %146 = sbr.rel (0) target = $region49
    $region48: #{tpu_custom_call.1} parent=1 // pred_region
      %s148 = ssub.s32 65536, 65536
      %149 = vsyncadd [#allocation21], %s148
      %s150 = sshll.u32 [#allocation20], 4
      %s151 = int_to_ptr.vmem [resolvable:$true] %s150
      %156 = dma.hbm_to_vmem [thread:$0]  %s11, 65536, %s151, [#allocation21], 1024, 1024, 64
    $region49: #{tpu_custom_call.1} parent=1 // pred_fallthru
      _
    // Predicated region
    $region50: #{tpu_custom_call.1} parent=1 // pred_check
      _
    $region51: #{tpu_custom_call.1} parent=1 // pred_check_branch
      %158 = sbr.rel (0) target = $region53
    $region52: #{tpu_custom_call.1} parent=1 // pred_region
      %s160 = ssub.s32 128, 128
      %161 = vsyncadd [#allocation21], %s160
      %s163 = sshll.u32 [#allocation22], 4
      %s164 = int_to_ptr.vmem [resolvable:$true] %s163
      %166 = dma.hbm_to_vmem [thread:$0]  %s12, 128, %s164, [#allocation21]
    $region53: #{tpu_custom_call.1} parent=1 // pred_fallthru
      _
    // Predicated region
    $region54: #{tpu_custom_call.1} parent=1 // pred_check
      _
    $region55: #{tpu_custom_call.1} parent=1 // pred_check_branch
      %168 = sbr.rel (0) target = $region57
    $region56: #{tpu_custom_call.1} parent=1 // pred_region
      %s170 = ssub.s32 128, 128
      %171 = vsyncadd [#allocation24], %s170
      %s173 = sshll.u32 [#allocation23], 4
      %s174 = int_to_ptr.vmem [resolvable:$true] %s173
      %176 = dma.hbm_to_vmem [thread:$0]  %s13, 128, %s174, [#allocation24]
    $region57: #{tpu_custom_call.1} parent=1 // pred_fallthru
      _
    // Predicated region
    $region58: #{tpu_custom_call.1} parent=1 // pred_check
      _
    $region59: #{tpu_custom_call.1} parent=1 // pred_check_branch
      %178 = sbr.rel (0) target = $region61
    $region60: #{tpu_custom_call.1} parent=1 // pred_region
      %s180 = ssub.s32 128, 128
      %181 = vsyncadd [#allocation24], %s180
      %s183 = sshll.u32 [#allocation25], 4
      %s184 = int_to_ptr.vmem [resolvable:$true] %s183
      %186 = dma.hbm_to_vmem [thread:$0]  %s14, 128, %s184, [#allocation24]
    $region61: #{tpu_custom_call.1} parent=1 // pred_fallthru
      _
    // Predicated region
    $region62: #{tpu_custom_call.1} parent=1 // pred_check
      _
    $region63: #{tpu_custom_call.1} parent=1 // pred_check_branch
      %188 = sbr.rel (0) target = $region65
    $region64: #{tpu_custom_call.1} parent=1 // pred_region
      %189 = dma.done [#allocation3], 128
    $region65: #{tpu_custom_call.1} parent=1 // pred_fallthru
      _
    // Predicated region
    $region66: #{tpu_custom_call.1} parent=1 // pred_check
      _
    $region67: #{tpu_custom_call.1} parent=1 // pred_check_branch
      %191 = sbr.rel (0) target = $region69
    $region68: #{tpu_custom_call.1} parent=1 // pred_region
      %192 = dma.done [#allocation6], 2048
    $region69: #{tpu_custom_call.1} parent=1 // pred_fallthru
      _
    // Predicated region
    $region70: #{tpu_custom_call.1} parent=1 // pred_check
      _
    $region71: #{tpu_custom_call.1} parent=1 // pred_check_branch
      %194 = sbr.rel (0) target = $region73
    $region72: #{tpu_custom_call.1} parent=1 // pred_region
      %195 = dma.done [#allocation6], 16
    $region73: #{tpu_custom_call.1} parent=1 // pred_fallthru
      _
    // Predicated region
    $region74: #{tpu_custom_call.1} parent=1 // pred_check
      _
    $region75: #{tpu_custom_call.1} parent=1 // pred_check_branch
      %197 = sbr.rel (0) target = $region77
    $region76: #{tpu_custom_call.1} parent=1 // pred_region
      %198 = dma.done [#allocation9], 4096
    $region77: #{tpu_custom_call.1} parent=1 // pred_fallthru
      _
    // Predicated region
    $region78: #{tpu_custom_call.1} parent=1 // pred_check
      _
    $region79: #{tpu_custom_call.1} parent=1 // pred_check_branch
      %200 = sbr.rel (0) target = $region81
    $region80: #{tpu_custom_call.1} parent=1 // pred_region
      %201 = dma.done [#allocation9], 32
    $region81: #{tpu_custom_call.1} parent=1 // pred_fallthru
      _
    // Predicated region
    $region82: #{tpu_custom_call.1} parent=1 // pred_check
      _
    $region83: #{tpu_custom_call.1} parent=1 // pred_check_branch
      %203 = sbr.rel (0) target = $region85
    $region84: #{tpu_custom_call.1} parent=1 // pred_region
      %204 = dma.done [#allocation12], 32
    $region85: #{tpu_custom_call.1} parent=1 // pred_fallthru
      _
    // Predicated region
    $region86: #{tpu_custom_call.1} parent=1 // pred_check
      _
    $region87: #{tpu_custom_call.1} parent=1 // pred_check_branch
      %206 = sbr.rel (0) target = $region89
    $region88: #{tpu_custom_call.1} parent=1 // pred_region
      %207 = dma.done [#allocation12], 32
    $region89: #{tpu_custom_call.1} parent=1 // pred_fallthru
      _
    // Predicated region
    $region90: #{tpu_custom_call.1} parent=1 // pred_check
      _
    $region91: #{tpu_custom_call.1} parent=1 // pred_check_branch
      %209 = sbr.rel (0) target = $region93
    $region92: #{tpu_custom_call.1} parent=1 // pred_region
      %210 = dma.done [#allocation15], 16384
    $region93: #{tpu_custom_call.1} parent=1 // pred_fallthru
      _
    // Predicated region
    $region94: #{tpu_custom_call.1} parent=1 // pred_check
      _
    $region95: #{tpu_custom_call.1} parent=1 // pred_check_branch
      %212 = sbr.rel (0) target = $region97
    $region96: #{tpu_custom_call.1} parent=1 // pred_region
      %213 = dma.done [#allocation15], 64
    $region97: #{tpu_custom_call.1} parent=1 // pred_fallthru
      _
    // Predicated region
    $region98: #{tpu_custom_call.1} parent=1 // pred_check
      _
    $region99: #{tpu_custom_call.1} parent=1 // pred_check_branch
      %215 = sbr.rel (0) target = $region101
    $region100: #{tpu_custom_call.1} parent=1 // pred_region
      %216 = dma.done [#allocation18], 64
    $region101: #{tpu_custom_call.1} parent=1 // pred_fallthru
      _
    // Predicated region
    $region102: #{tpu_custom_call.1} parent=1 // pred_check
      _
    $region103: #{tpu_custom_call.1} parent=1 // pred_check_branch
      %218 = sbr.rel (0) target = $region105
    $region104: #{tpu_custom_call.1} parent=1 // pred_region
      %219 = dma.done [#allocation18], 64
    $region105: #{tpu_custom_call.1} parent=1 // pred_fallthru
      _
    // Predicated region
    $region106: #{tpu_custom_call.1} parent=1 // pred_check
      _
    $region107: #{tpu_custom_call.1} parent=1 // pred_check_branch
      %221 = sbr.rel (0) target = $region109
    $region108: #{tpu_custom_call.1} parent=1 // pred_region
      %222 = dma.done [#allocation21], 65536
    $region109: #{tpu_custom_call.1} parent=1 // pred_fallthru
      _
    // Predicated region
    $region110: #{tpu_custom_call.1} parent=1 // pred_check
      _
    $region111: #{tpu_custom_call.1} parent=1 // pred_check_branch
      %224 = sbr.rel (0) target = $region113
    $region112: #{tpu_custom_call.1} parent=1 // pred_region
      %225 = dma.done [#allocation21], 128
    $region113: #{tpu_custom_call.1} parent=1 // pred_fallthru
      _
    // Predicated region
    $region114: #{tpu_custom_call.1} parent=1 // pred_check
      _
    $region115: #{tpu_custom_call.1} parent=1 // pred_check_branch
      %227 = sbr.rel (0) target = $region117
    $region116: #{tpu_custom_call.1} parent=1 // pred_region
      %228 = dma.done [#allocation24], 128
    $region117: #{tpu_custom_call.1} parent=1 // pred_fallthru
      _
    // Predicated region
    $region118: #{tpu_custom_call.1} parent=1 // pred_check
      _
    $region119: #{tpu_custom_call.1} parent=1 // pred_check_branch
      %230 = sbr.rel (0) target = $region121
    $region120: #{tpu_custom_call.1} parent=1 // pred_region
      %231 = dma.done [#allocation24], 128
    $region121: #{tpu_custom_call.1} parent=1 // pred_fallthru
      _
    %v232 = vld [vmem:[#allocation2] sm:$0xff]
    %v233 = vld [vmem:[#allocation5] sm:$0xff]
    %v234 = vld [vmem:[#allocation5 + $0x8] sm:$0xff]
    %v235 = vld [vmem:[#allocation5 + $0x10] sm:$0xff]
    %v236 = vld [vmem:[#allocation5 + $0x18] sm:$0xff]
    %v237 = vld [vmem:[#allocation5 + $0x20] sm:$0xff]
    %v238 = vld [vmem:[#allocation5 + $0x28] sm:$0xff]
    %v239 = vld [vmem:[#allocation5 + $0x30] sm:$0xff]
    %v240 = vld [vmem:[#allocation5 + $0x38] sm:$0xff]
    %v241 = vld [vmem:[#allocation5 + $0x40] sm:$0xff]
    %v242 = vld [vmem:[#allocation5 + $0x48] sm:$0xff]
    %v243 = vld [vmem:[#allocation5 + $0x50] sm:$0xff]
    %v244 = vld [vmem:[#allocation5 + $0x58] sm:$0xff]
    %v245 = vld [vmem:[#allocation5 + $0x60] sm:$0xff]
    %v246 = vld [vmem:[#allocation5 + $0x68] sm:$0xff]
    %v247 = vld [vmem:[#allocation5 + $0x70] sm:$0xff]
    %v248 = vld [vmem:[#allocation5 + $0x78] sm:$0xff]
    %v249 = vld [vmem:[#allocation7] sm:$0x1]
    %v251 = vlaneseq
    %v252 = vshrl.u32 %v251, 7
    %v253 = vsub.s32 0, %v252
    %v254 = vrot.slane %v249, %v253
    %256 = vmatprep.subr.mxu0 0.0
    %257 = vmatpush1.msra.mxu0 %v233
    %258 = vmatprep.subr.mxu0 0.0
    %259 = vmatpush1.msra.mxu0 %v234
    %260 = vmatprep.subr.mxu0 0.0
    %261 = vmatpush1.msra.mxu0 %v235
    %262 = vmatprep.subr.mxu0 0.0
    %263 = vmatpush1.msra.mxu0 %v236
    %264 = vmatprep.subr.mxu0 0.0
    %265 = vmatpush1.msra.mxu0 %v237
    %266 = vmatprep.subr.mxu0 0.0
    %267 = vmatpush1.msra.mxu0 %v238
    %268 = vmatprep.subr.mxu0 0.0
    %269 = vmatpush1.msra.mxu0 %v239
    %270 = vmatprep.subr.mxu0 0.0
    %271 = vmatpush1.msra.mxu0 %v240
    %272 = vmatprep.subr.mxu0 0.0
    %273 = vmatpush1.msra.mxu0 %v241
    %274 = vmatprep.subr.mxu0 0.0
    %275 = vmatpush1.msra.mxu0 %v242
    %276 = vmatprep.subr.mxu0 0.0
    %277 = vmatpush1.msra.mxu0 %v243
    %278 = vmatprep.subr.mxu0 0.0
    %279 = vmatpush1.msra.mxu0 %v244
    %280 = vmatprep.subr.mxu0 0.0
    %281 = vmatpush1.msra.mxu0 %v245
    %282 = vmatprep.subr.mxu0 0.0
    %283 = vmatpush1.msra.mxu0 %v246
    %284 = vmatprep.subr.mxu0 0.0
    %285 = vmatpush1.msra.mxu0 %v247
    %286 = vmatprep.subr.mxu0 0.0
    %287 = vmatpush1.msra.mxu0 %v248
    %288 = vmatprep.subr.mxu0 0.0
    %289 = vmatpush1.msra.mxu0 0.0
    %290 = vmatprep.subr.mxu0 0.0
    %291 = vmatpush1.msra.mxu0 0.0
    %292 = vmatprep.subr.mxu0 0.0
    %293 = vmatpush1.msra.mxu0 0.0
    %294 = vmatprep.subr.mxu0 0.0
    %295 = vmatpush1.msra.mxu0 0.0
    %296 = vmatprep.subr.mxu0 0.0
    %297 = vmatpush1.msra.mxu0 0.0
    %298 = vmatprep.subr.mxu0 0.0
    %299 = vmatpush1.msra.mxu0 0.0
    %300 = vmatprep.subr.mxu0 0.0
    %301 = vmatpush1.msra.mxu0 0.0
    %302 = vmatprep.subr.mxu0 0.0
    %303 = vmatpush1.msra.mxu0 0.0
    %304 = vmatprep.subr.mxu0 0.0
    %305 = vmatpush1.msra.mxu0 0.0
    %306 = vmatprep.subr.mxu0 0.0
    %307 = vmatpush1.msra.mxu0 0.0
    %308 = vmatprep.subr.mxu0 0.0
    %309 = vmatpush1.msra.mxu0 0.0
    %310 = vmatprep.subr.mxu0 0.0
    %311 = vmatpush1.msra.mxu0 0.0
    %312 = vmatprep.subr.mxu0 0.0
    %313 = vmatpush1.msra.mxu0 0.0
    %314 = vmatprep.subr.mxu0 0.0
    %315 = vmatpush1.msra.mxu0 0.0
    %316 = vmatprep.subr.mxu0 0.0
    %317 = vmatpush1.msra.mxu0 0.0
    %318 = vmatprep.subr.mxu0 0.0
    %319 = vmatpush1.msra.mxu0 0.0
    %320 = vmatprep.mubr.f32.mxu0 0.0
    %321 = vmatmul.mubr.f32.gmra.mrb[0].mxu0 %v232
    %v322 = vpop.f32.mrb[0].mxu0
    %v323 = vadd.f32 %v254, %v322
    %v324 = vpop.f32.mrb[0].mxu0
    %325 = vdwg.mxu0
    %vm326 = vcmp.ge.f32.partialorder %v323, 0.0
    %v327 = vmul.f32 %v323, 0.2
    %v328 = vsel %vm326, %v323, %v327
    %v329 = vld [vmem:[#allocation8] sm:$0xff]
    %v330 = vld [vmem:[#allocation8 + $0x8] sm:$0xff]
    %v331 = vld [vmem:[#allocation8 + $0x10] sm:$0xff]
    %v332 = vld [vmem:[#allocation8 + $0x18] sm:$0xff]
    %v333 = vld [vmem:[#allocation8 + $0x20] sm:$0xff]
    %v334 = vld [vmem:[#allocation8 + $0x28] sm:$0xff]
    %v335 = vld [vmem:[#allocation8 + $0x30] sm:$0xff]
    %v336 = vld [vmem:[#allocation8 + $0x38] sm:$0xff]
    %v337 = vld [vmem:[#allocation8 + $0x40] sm:$0xff]
    %v338 = vld [vmem:[#allocation8 + $0x48] sm:$0xff]
    %v339 = vld [vmem:[#allocation8 + $0x50] sm:$0xff]
    %v340 = vld [vmem:[#allocation8 + $0x58] sm:$0xff]
    %v341 = vld [vmem:[#allocation8 + $0x60] sm:$0xff]
    %v342 = vld [vmem:[#allocation8 + $0x68] sm:$0xff]
    %v343 = vld [vmem:[#allocation8 + $0x70] sm:$0xff]
    %v344 = vld [vmem:[#allocation8 + $0x78] sm:$0xff]
    %v345 = vld [vmem:[#allocation8 + $0x80] sm:$0xff]
    %v346 = vld [vmem:[#allocation8 + $0x88] sm:$0xff]
    %v347 = vld [vmem:[#allocation8 + $0x90] sm:$0xff]
    %v348 = vld [vmem:[#allocation8 + $0x98] sm:$0xff]
    %v349 = vld [vmem:[#allocation8 + $0xa0] sm:$0xff]
    %v350 = vld [vmem:[#allocation8 + $0xa8] sm:$0xff]
    %v351 = vld [vmem:[#allocation8 + $0xb0] sm:$0xff]
    %v352 = vld [vmem:[#allocation8 + $0xb8] sm:$0xff]
    %v353 = vld [vmem:[#allocation8 + $0xc0] sm:$0xff]
    %v354 = vld [vmem:[#allocation8 + $0xc8] sm:$0xff]
    %v355 = vld [vmem:[#allocation8 + $0xd0] sm:$0xff]
    %v356 = vld [vmem:[#allocation8 + $0xd8] sm:$0xff]
    %v357 = vld [vmem:[#allocation8 + $0xe0] sm:$0xff]
    %v358 = vld [vmem:[#allocation8 + $0xe8] sm:$0xff]
    %v359 = vld [vmem:[#allocation8 + $0xf0] sm:$0xff]
    %v360 = vld [vmem:[#allocation8 + $0xf8] sm:$0xff]
    %v361 = vld [vmem:[#allocation10] sm:$0x3]
    %v363 = vlaneseq
    %v364 = vshrl.u32 %v363, 7
    %v365 = vsub.s32 0, %v364
    %v366 = vrot.slane %v361, %v365
    %v367 = vlaneseq
    %v368 = vshrl.u32 %v367, 7
    %v369 = vsub.s32 1, %v368
    %v370 = vrot.slane %v361, %v369
    %373 = vmatprep.subr.mxu0 %v330
    %374 = vmatpush1.msra.mxu0 %v329
    %375 = vmatprep.subr.mxu0 %v332
    %376 = vmatpush1.msra.mxu0 %v331
    %377 = vmatprep.subr.mxu0 %v334
    %378 = vmatpush1.msra.mxu0 %v333
    %379 = vmatprep.subr.mxu0 %v336
    %380 = vmatpush1.msra.mxu0 %v335
    %381 = vmatprep.subr.mxu0 %v338
    %382 = vmatpush1.msra.mxu0 %v337
    %383 = vmatprep.subr.mxu0 %v340
    %384 = vmatpush1.msra.mxu0 %v339
    %385 = vmatprep.subr.mxu0 %v342
    %386 = vmatpush1.msra.mxu0 %v341
    %387 = vmatprep.subr.mxu0 %v344
    %388 = vmatpush1.msra.mxu0 %v343
    %389 = vmatprep.subr.mxu0 %v346
    %390 = vmatpush1.msra.mxu0 %v345
    %391 = vmatprep.subr.mxu0 %v348
    %392 = vmatpush1.msra.mxu0 %v347
    %393 = vmatprep.subr.mxu0 %v350
    %394 = vmatpush1.msra.mxu0 %v349
    %395 = vmatprep.subr.mxu0 %v352
    %396 = vmatpush1.msra.mxu0 %v351
    %397 = vmatprep.subr.mxu0 %v354
    %398 = vmatpush1.msra.mxu0 %v353
    %399 = vmatprep.subr.mxu0 %v356
    %400 = vmatpush1.msra.mxu0 %v355
    %401 = vmatprep.subr.mxu0 %v358
    %402 = vmatpush1.msra.mxu0 %v357
    %403 = vmatprep.subr.mxu0 %v360
    %404 = vmatpush1.msra.mxu0 %v359
    %405 = vmatprep.subr.mxu0 0.0
    %406 = vmatpush1.msra.mxu0 0.0
    %407 = vmatprep.subr.mxu0 0.0
    %408 = vmatpush1.msra.mxu0 0.0
    %409 = vmatprep.subr.mxu0 0.0
    %410 = vmatpush1.msra.mxu0 0.0
    %411 = vmatprep.subr.mxu0 0.0
    %412 = vmatpush1.msra.mxu0 0.0
    %413 = vmatprep.subr.mxu0 0.0
    %414 = vmatpush1.msra.mxu0 0.0
    %415 = vmatprep.subr.mxu0 0.0
    %416 = vmatpush1.msra.mxu0 0.0
    %417 = vmatprep.subr.mxu0 0.0
    %418 = vmatpush1.msra.mxu0 0.0
    %419 = vmatprep.subr.mxu0 0.0
    %420 = vmatpush1.msra.mxu0 0.0
    %421 = vmatprep.subr.mxu0 0.0
    %422 = vmatpush1.msra.mxu0 0.0
    %423 = vmatprep.subr.mxu0 0.0
    %424 = vmatpush1.msra.mxu0 0.0
    %425 = vmatprep.subr.mxu0 0.0
    %426 = vmatpush1.msra.mxu0 0.0
    %427 = vmatprep.subr.mxu0 0.0
    %428 = vmatpush1.msra.mxu0 0.0
    %429 = vmatprep.subr.mxu0 0.0
    %430 = vmatpush1.msra.mxu0 0.0
    %431 = vmatprep.subr.mxu0 0.0
    %432 = vmatpush1.msra.mxu0 0.0
    %433 = vmatprep.subr.mxu0 0.0
    %434 = vmatpush1.msra.mxu0 0.0
    %435 = vmatprep.subr.mxu0 0.0
    %436 = vmatpush1.msra.mxu0 0.0
    %437 = vmatprep.mubr.f32.mxu0 0.0
    %438 = vmatmul.mubr.f32.gmra.mrb[0].mxu0 %v328
    %v439 = vpop.f32.mrb[0].mxu0
    %v440 = vadd.f32 %v366, %v439
    %v441 = vpop.f32.mrb[0].mxu0
    %v442 = vadd.f32 %v370, %v441
    %443 = vdwg.mxu0
    %v444 = vld [vmem:[#allocation11] sm:$0x3]
    %v445 = vld [vmem:[#allocation13] sm:$0x3]
    %v446 = vrot.slane %v440, 4
    %v447 = vadd.f32 %v440, %v446
    %v448 = vrot.slane %v447, 2
    %v449 = vadd.f32 %v447, %v448
    %v450 = vrot.slane %v449, 1
    %v451 = vadd.f32 %v449, %v450
    %v452 = vrot.slane %v442, 4
    %v453 = vadd.f32 %v442, %v452
    %v454 = vrot.slane %v453, 2
    %v455 = vadd.f32 %v453, %v454
    %v456 = vrot.slane %v455, 1
    %v457 = vadd.f32 %v455, %v456
    %v458 = vrcp.pop 8.0
    %v459 = vmul.f32 %v451, %v458
    %v460 = vmul.f32 %v457, %v458
    %v461 = vsub.f32 %v440, %v459
    %v462 = vsub.f32 %v442, %v460
    %v463 = vmul.f32 %v461, %v461
    %v464 = vmul.f32 %v462, %v462
    %v465 = vrot.slane %v463, 4
    %v466 = vadd.f32 %v463, %v465
    %v467 = vrot.slane %v466, 2
    %v468 = vadd.f32 %v466, %v467
    %v469 = vrot.slane %v468, 1
    %v470 = vadd.f32 %v468, %v469
    %v471 = vrot.slane %v464, 4
    %v472 = vadd.f32 %v464, %v471
    %v473 = vrot.slane %v472, 2
    %v474 = vadd.f32 %v472, %v473
    %v475 = vrot.slane %v474, 1
    %v476 = vadd.f32 %v474, %v475
    %v477 = vmul.f32 %v470, %v458
    %v478 = vmul.f32 %v476, %v458
    %v480 = vlaneseq
    %v481 = vshrl.u32 %v480, 7
    %v482 = vsub.s32 0, %v481
    %v483 = vrot.slane %v444, %v482
    %v484 = vlaneseq
    %v485 = vshrl.u32 %v484, 7
    %v486 = vsub.s32 1, %v485
    %v487 = vrot.slane %v444, %v486
    %v490 = vmul.f32 %v483, %v461
    %v491 = vmul.f32 %v487, %v462
    %v492 = vadd.f32 %v477, 0.9
    %v493 = vadd.f32 %v478, 0.9
    %v494 = vrsqrt.pop %v492
    %v495 = vrsqrt.pop %v493
    %v496 = vmul.f32 %v490, %v494
    %v497 = vmul.f32 %v491, %v495
    %v499 = vlaneseq
    %v500 = vshrl.u32 %v499, 7
    %v501 = vsub.s32 0, %v500
    %v502 = vrot.slane %v445, %v501
    %v503 = vlaneseq
    %v504 = vshrl.u32 %v503, 7
    %v505 = vsub.s32 1, %v504
    %v506 = vrot.slane %v445, %v505
    %v509 = vadd.f32 %v496, %v502
    %v510 = vadd.f32 %v497, %v506
    %vm511 = vcmp.ge.f32.partialorder %v509, 0.0
    %vm512 = vcmp.ge.f32.partialorder %v510, 0.0
    %v513 = vmul.f32 %v509, 0.2
    %v514 = vmul.f32 %v510, 0.2
    %v515 = vsel %vm511, %v509, %v513
    %v516 = vsel %vm512, %v510, %v514
    %v517 = vld [vmem:[#allocation14] sm:$0xff]
    %v518 = vld [vmem:[#allocation14 + $0x8] sm:$0xff]
    %v519 = vld [vmem:[#allocation14 + $0x10] sm:$0xff]
    %v520 = vld [vmem:[#allocation14 + $0x18] sm:$0xff]
    %v521 = vld [vmem:[#allocation14 + $0x20] sm:$0xff]
    %v522 = vld [vmem:[#allocation14 + $0x28] sm:$0xff]
    %v523 = vld [vmem:[#allocation14 + $0x30] sm:$0xff]
    %v524 = vld [vmem:[#allocation14 + $0x38] sm:$0xff]
    %v525 = vld [vmem:[#allocation14 + $0x40] sm:$0xff]
    %v526 = vld [vmem:[#allocation14 + $0x48] sm:$0xff]
    %v527 = vld [vmem:[#allocation14 + $0x50] sm:$0xff]
    %v528 = vld [vmem:[#allocation14 + $0x58] sm:$0xff]
    %v529 = vld [vmem:[#allocation14 + $0x60] sm:$0xff]
    %v530 = vld [vmem:[#allocation14 + $0x68] sm:$0xff]
    %v531 = vld [vmem:[#allocation14 + $0x70] sm:$0xff]
    %v532 = vld [vmem:[#allocation14 + $0x78] sm:$0xff]
    %v533 = vld [vmem:[#allocation14 + $0x80] sm:$0xff]
    %v534 = vld [vmem:[#allocation14 + $0x88] sm:$0xff]
    %v535 = vld [vmem:[#allocation14 + $0x90] sm:$0xff]
    %v536 = vld [vmem:[#allocation14 + $0x98] sm:$0xff]
    %v537 = vld [vmem:[#allocation14 + $0xa0] sm:$0xff]
    %v538 = vld [vmem:[#allocation14 + $0xa8] sm:$0xff]
    %v539 = vld [vmem:[#allocation14 + $0xb0] sm:$0xff]
    %v540 = vld [vmem:[#allocation14 + $0xb8] sm:$0xff]
    %v541 = vld [vmem:[#allocation14 + $0xc0] sm:$0xff]
    %v542 = vld [vmem:[#allocation14 + $0xc8] sm:$0xff]
    %v543 = vld [vmem:[#allocation14 + $0xd0] sm:$0xff]
    %v544 = vld [vmem:[#allocation14 + $0xd8] sm:$0xff]
    %v545 = vld [vmem:[#allocation14 + $0xe0] sm:$0xff]
    %v546 = vld [vmem:[#allocation14 + $0xe8] sm:$0xff]
    %v547 = vld [vmem:[#allocation14 + $0xf0] sm:$0xff]
    %v548 = vld [vmem:[#allocation14 + $0xf8] sm:$0xff]
    %v549 = vld [vmem:[#allocation14 + $0x100] sm:$0xff]
    %v550 = vld [vmem:[#allocation14 + $0x108] sm:$0xff]
    %v551 = vld [vmem:[#allocation14 + $0x110] sm:$0xff]
    %v552 = vld [vmem:[#allocation14 + $0x118] sm:$0xff]
    %v553 = vld [vmem:[#allocation14 + $0x120] sm:$0xff]
    %v554 = vld [vmem:[#allocation14 + $0x128] sm:$0xff]
    %v555 = vld [vmem:[#allocation14 + $0x130] sm:$0xff]
    %v556 = vld [vmem:[#allocation14 + $0x138] sm:$0xff]
    %v557 = vld [vmem:[#allocation14 + $0x140] sm:$0xff]
    %v558 = vld [vmem:[#allocation14 + $0x148] sm:$0xff]
    %v559 = vld [vmem:[#allocation14 + $0x150] sm:$0xff]
    %v560 = vld [vmem:[#allocation14 + $0x158] sm:$0xff]
    %v561 = vld [vmem:[#allocation14 + $0x160] sm:$0xff]
    %v562 = vld [vmem:[#allocation14 + $0x168] sm:$0xff]
    %v563 = vld [vmem:[#allocation14 + $0x170] sm:$0xff]
    %v564 = vld [vmem:[#allocation14 + $0x178] sm:$0xff]
    %v565 = vld [vmem:[#allocation14 + $0x180] sm:$0xff]
    %v566 = vld [vmem:[#allocation14 + $0x188] sm:$0xff]
    %v567 = vld [vmem:[#allocation14 + $0x190] sm:$0xff]
    %v568 = vld [vmem:[#allocation14 + $0x198] sm:$0xff]
    %v569 = vld [vmem:[#allocation14 + $0x1a0] sm:$0xff]
    %v570 = vld [vmem:[#allocation14 + $0x1a8] sm:$0xff]
    %v571 = vld [vmem:[#allocation14 + $0x1b0] sm:$0xff]
    %v572 = vld [vmem:[#allocation14 + $0x1b8] sm:$0xff]
    %v573 = vld [vmem:[#allocation14 + $0x1c0] sm:$0xff]
    %v574 = vld [vmem:[#allocation14 + $0x1c8] sm:$0xff]
    %v575 = vld [vmem:[#allocation14 + $0x1d0] sm:$0xff]
    %v576 = vld [vmem:[#allocation14 + $0x1d8] sm:$0xff]
    %v577 = vld [vmem:[#allocation14 + $0x1e0] sm:$0xff]
    %v578 = vld [vmem:[#allocation14 + $0x1e8] sm:$0xff]
    %v579 = vld [vmem:[#allocation14 + $0x1f0] sm:$0xff]
    %v580 = vld [vmem:[#allocation14 + $0x1f8] sm:$0xff]
    %v581 = vld [vmem:[#allocation14 + $0x200] sm:$0xff]
    %v582 = vld [vmem:[#allocation14 + $0x208] sm:$0xff]
    %v583 = vld [vmem:[#allocation14 + $0x210] sm:$0xff]
    %v584 = vld [vmem:[#allocation14 + $0x218] sm:$0xff]
    %v585 = vld [vmem:[#allocation14 + $0x220] sm:$0xff]
    %v586 = vld [vmem:[#allocation14 + $0x228] sm:$0xff]
    %v587 = vld [vmem:[#allocation14 + $0x230] sm:$0xff]
    %v588 = vld [vmem:[#allocation14 + $0x238] sm:$0xff]
    %v589 = vld [vmem:[#allocation14 + $0x240] sm:$0xff]
    %v590 = vld [vmem:[#allocation14 + $0x248] sm:$0xff]
    %v591 = vld [vmem:[#allocation14 + $0x250] sm:$0xff]
    %v592 = vld [vmem:[#allocation14 + $0x258] sm:$0xff]
    %v593 = vld [vmem:[#allocation14 + $0x260] sm:$0xff]
    %v594 = vld [vmem:[#allocation14 + $0x268] sm:$0xff]
    %v595 = vld [vmem:[#allocation14 + $0x270] sm:$0xff]
    %v596 = vld [vmem:[#allocation14 + $0x278] sm:$0xff]
    %v597 = vld [vmem:[#allocation14 + $0x280] sm:$0xff]
    %v598 = vld [vmem:[#allocation14 + $0x288] sm:$0xff]
    %v599 = vld [vmem:[#allocation14 + $0x290] sm:$0xff]
    %v600 = vld [vmem:[#allocation14 + $0x298] sm:$0xff]
    %v601 = vld [vmem:[#allocation14 + $0x2a0] sm:$0xff]
    %v602 = vld [vmem:[#allocation14 + $0x2a8] sm:$0xff]
    %v603 = vld [vmem:[#allocation14 + $0x2b0] sm:$0xff]
    %v604 = vld [vmem:[#allocation14 + $0x2b8] sm:$0xff]
    %v605 = vld [vmem:[#allocation14 + $0x2c0] sm:$0xff]
    %v606 = vld [vmem:[#allocation14 + $0x2c8] sm:$0xff]
    %v607 = vld [vmem:[#allocation14 + $0x2d0] sm:$0xff]
    %v608 = vld [vmem:[#allocation14 + $0x2d8] sm:$0xff]
    %v609 = vld [vmem:[#allocation14 + $0x2e0] sm:$0xff]
    %v610 = vld [vmem:[#allocation14 + $0x2e8] sm:$0xff]
    %v611 = vld [vmem:[#allocation14 + $0x2f0] sm:$0xff]
    %v612 = vld [vmem:[#allocation14 + $0x2f8] sm:$0xff]
    %v613 = vld [vmem:[#allocation14 + $0x300] sm:$0xff]
    %v614 = vld [vmem:[#allocation14 + $0x308] sm:$0xff]
    %v615 = vld [vmem:[#allocation14 + $0x310] sm:$0xff]
    %v616 = vld [vmem:[#allocation14 + $0x318] sm:$0xff]
    %v617 = vld [vmem:[#allocation14 + $0x320] sm:$0xff]
    %v618 = vld [vmem:[#allocation14 + $0x328] sm:$0xff]
    %v619 = vld [vmem:[#allocation14 + $0x330] sm:$0xff]
    %v620 = vld [vmem:[#allocation14 + $0x338] sm:$0xff]
    %v621 = vld [vmem:[#allocation14 + $0x340] sm:$0xff]
    %v622 = vld [vmem:[#allocation14 + $0x348] sm:$0xff]
    %v623 = vld [vmem:[#allocation14 + $0x350] sm:$0xff]
    %v624 = vld [vmem:[#allocation14 + $0x358] sm:$0xff]
    %v625 = vld [vmem:[#allocation14 + $0x360] sm:$0xff]
    %v626 = vld [vmem:[#allocation14 + $0x368] sm:$0xff]
    %v627 = vld [vmem:[#allocation14 + $0x370] sm:$0xff]
    %v628 = vld [vmem:[#allocation14 + $0x378] sm:$0xff]
    %v629 = vld [vmem:[#allocation14 + $0x380] sm:$0xff]
    %v630 = vld [vmem:[#allocation14 + $0x388] sm:$0xff]
    %v631 = vld [vmem:[#allocation14 + $0x390] sm:$0xff]
    %v632 = vld [vmem:[#allocation14 + $0x398] sm:$0xff]
    %v633 = vld [vmem:[#allocation14 + $0x3a0] sm:$0xff]
    %v634 = vld [vmem:[#allocation14 + $0x3a8] sm:$0xff]
    %v635 = vld [vmem:[#allocation14 + $0x3b0] sm:$0xff]
    %v636 = vld [vmem:[#allocation14 + $0x3b8] sm:$0xff]
    %v637 = vld [vmem:[#allocation14 + $0x3c0] sm:$0xff]
    %v638 = vld [vmem:[#allocation14 + $0x3c8] sm:$0xff]
    %v639 = vld [vmem:[#allocation14 + $0x3d0] sm:$0xff]
    %v640 = vld [vmem:[#allocation14 + $0x3d8] sm:$0xff]
    %v641 = vld [vmem:[#allocation14 + $0x3e0] sm:$0xff]
    %v642 = vld [vmem:[#allocation14 + $0x3e8] sm:$0xff]
    %v643 = vld [vmem:[#allocation14 + $0x3f0] sm:$0xff]
    %v644 = vld [vmem:[#allocation14 + $0x3f8] sm:$0xff]
    %v645 = vld [vmem:[#allocation16] sm:$0xf]
    %v647 = vlaneseq
    %v648 = vshrl.u32 %v647, 7
    %v649 = vsub.s32 0, %v648
    %v650 = vrot.slane %v645, %v649
    %v651 = vlaneseq
    %v652 = vshrl.u32 %v651, 7
    %v653 = vsub.s32 1, %v652
    %v654 = vrot.slane %v645, %v653
    %v655 = vlaneseq
    %v656 = vshrl.u32 %v655, 7
    %v657 = vsub.s32 2, %v656
    %v658 = vrot.slane %v645, %v657
    %v659 = vlaneseq
    %v660 = vshrl.u32 %v659, 7
    %v661 = vsub.s32 3, %v660
    %v662 = vrot.slane %v645, %v661
    %667 = vmatprep.subr.mxu0 %v518
    %668 = vmatpush1.msra.mxu0 %v517
    %669 = vmatprep.subr.mxu0 %v522
    %670 = vmatpush1.msra.mxu0 %v521
    %671 = vmatprep.subr.mxu0 %v526
    %672 = vmatpush1.msra.mxu0 %v525
    %673 = vmatprep.subr.mxu0 %v530
    %674 = vmatpush1.msra.mxu0 %v529
    %675 = vmatprep.subr.mxu0 %v534
    %676 = vmatpush1.msra.mxu0 %v533
    %677 = vmatprep.subr.mxu0 %v538
    %678 = vmatpush1.msra.mxu0 %v537
    %679 = vmatprep.subr.mxu0 %v542
    %680 = vmatpush1.msra.mxu0 %v541
    %681 = vmatprep.subr.mxu0 %v546
    %682 = vmatpush1.msra.mxu0 %v545
    %683 = vmatprep.subr.mxu0 %v550
    %684 = vmatpush1.msra.mxu0 %v549
    %685 = vmatprep.subr.mxu0 %v554
    %686 = vmatpush1.msra.mxu0 %v553
    %687 = vmatprep.subr.mxu0 %v558
    %688 = vmatpush1.msra.mxu0 %v557
    %689 = vmatprep.subr.mxu0 %v562
    %690 = vmatpush1.msra.mxu0 %v561
    %691 = vmatprep.subr.mxu0 %v566
    %692 = vmatpush1.msra.mxu0 %v565
    %693 = vmatprep.subr.mxu0 %v570
    %694 = vmatpush1.msra.mxu0 %v569
    %695 = vmatprep.subr.mxu0 %v574
    %696 = vmatpush1.msra.mxu0 %v573
    %697 = vmatprep.subr.mxu0 %v578
    %698 = vmatpush1.msra.mxu0 %v577
    %699 = vmatprep.subr.mxu0 %v582
    %700 = vmatpush1.msra.mxu0 %v581
    %701 = vmatprep.subr.mxu0 %v586
    %702 = vmatpush1.msra.mxu0 %v585
    %703 = vmatprep.subr.mxu0 %v590
    %704 = vmatpush1.msra.mxu0 %v589
    %705 = vmatprep.subr.mxu0 %v594
    %706 = vmatpush1.msra.mxu0 %v593
    %707 = vmatprep.subr.mxu0 %v598
    %708 = vmatpush1.msra.mxu0 %v597
    %709 = vmatprep.subr.mxu0 %v602
    %710 = vmatpush1.msra.mxu0 %v601
    %711 = vmatprep.subr.mxu0 %v606
    %712 = vmatpush1.msra.mxu0 %v605
    %713 = vmatprep.subr.mxu0 %v610
    %714 = vmatpush1.msra.mxu0 %v609
    %715 = vmatprep.subr.mxu0 %v614
    %716 = vmatpush1.msra.mxu0 %v613
    %717 = vmatprep.subr.mxu0 %v618
    %718 = vmatpush1.msra.mxu0 %v617
    %719 = vmatprep.subr.mxu0 %v622
    %720 = vmatpush1.msra.mxu0 %v621
    %721 = vmatprep.subr.mxu0 %v626
    %722 = vmatpush1.msra.mxu0 %v625
    %723 = vmatprep.subr.mxu0 %v630
    %724 = vmatpush1.msra.mxu0 %v629
    %725 = vmatprep.subr.mxu0 %v634
    %726 = vmatpush1.msra.mxu0 %v633
    %727 = vmatprep.subr.mxu0 %v638
    %728 = vmatpush1.msra.mxu0 %v637
    %729 = vmatprep.subr.mxu0 %v642
    %730 = vmatpush1.msra.mxu0 %v641
    %731 = vmatprep.mubr.f32.mxu0 %v516
    %732 = vmatmul.mubr.f32.gmra.mrb[0].mxu0 %v515
    %v733 = vpop.f32.mrb[0].mxu0
    %v734 = vadd.f32 %v650, %v733
    %v735 = vpop.f32.mrb[0].mxu0
    %v736 = vadd.f32 %v654, %v735
    %737 = vdwg.mxu0
    %738 = vmatprep.subr.mxu0 %v520
    %739 = vmatpush1.msra.mxu0 %v519
    %740 = vmatprep.subr.mxu0 %v524
    %741 = vmatpush1.msra.mxu0 %v523
    %742 = vmatprep.subr.mxu0 %v528
    %743 = vmatpush1.msra.mxu0 %v527
    %744 = vmatprep.subr.mxu0 %v532
    %745 = vmatpush1.msra.mxu0 %v531
    %746 = vmatprep.subr.mxu0 %v536
    %747 = vmatpush1.msra.mxu0 %v535
    %748 = vmatprep.subr.mxu0 %v540
    %749 = vmatpush1.msra.mxu0 %v539
    %750 = vmatprep.subr.mxu0 %v544
    %751 = vmatpush1.msra.mxu0 %v543
    %752 = vmatprep.subr.mxu0 %v548
    %753 = vmatpush1.msra.mxu0 %v547
    %754 = vmatprep.subr.mxu0 %v552
    %755 = vmatpush1.msra.mxu0 %v551
    %756 = vmatprep.subr.mxu0 %v556
    %757 = vmatpush1.msra.mxu0 %v555
    %758 = vmatprep.subr.mxu0 %v560
    %759 = vmatpush1.msra.mxu0 %v559
    %760 = vmatprep.subr.mxu0 %v564
    %761 = vmatpush1.msra.mxu0 %v563
    %762 = vmatprep.subr.mxu0 %v568
    %763 = vmatpush1.msra.mxu0 %v567
    %764 = vmatprep.subr.mxu0 %v572
    %765 = vmatpush1.msra.mxu0 %v571
    %766 = vmatprep.subr.mxu0 %v576
    %767 = vmatpush1.msra.mxu0 %v575
    %768 = vmatprep.subr.mxu0 %v580
    %769 = vmatpush1.msra.mxu0 %v579
    %770 = vmatprep.subr.mxu0 %v584
    %771 = vmatpush1.msra.mxu0 %v583
    %772 = vmatprep.subr.mxu0 %v588
    %773 = vmatpush1.msra.mxu0 %v587
    %774 = vmatprep.subr.mxu0 %v592
    %775 = vmatpush1.msra.mxu0 %v591
    %776 = vmatprep.subr.mxu0 %v596
    %777 = vmatpush1.msra.mxu0 %v595
    %778 = vmatprep.subr.mxu0 %v600
    %779 = vmatpush1.msra.mxu0 %v599
    %780 = vmatprep.subr.mxu0 %v604
    %781 = vmatpush1.msra.mxu0 %v603
    %782 = vmatprep.subr.mxu0 %v608
    %783 = vmatpush1.msra.mxu0 %v607
    %784 = vmatprep.subr.mxu0 %v612
    %785 = vmatpush1.msra.mxu0 %v611
    %786 = vmatprep.subr.mxu0 %v616
    %787 = vmatpush1.msra.mxu0 %v615
    %788 = vmatprep.subr.mxu0 %v620
    %789 = vmatpush1.msra.mxu0 %v619
    %790 = vmatprep.subr.mxu0 %v624
    %791 = vmatpush1.msra.mxu0 %v623
    %792 = vmatprep.subr.mxu0 %v628
    %793 = vmatpush1.msra.mxu0 %v627
    %794 = vmatprep.subr.mxu0 %v632
    %795 = vmatpush1.msra.mxu0 %v631
    %796 = vmatprep.subr.mxu0 %v636
    %797 = vmatpush1.msra.mxu0 %v635
    %798 = vmatprep.subr.mxu0 %v640
    %799 = vmatpush1.msra.mxu0 %v639
    %800 = vmatprep.subr.mxu0 %v644
    %801 = vmatpush1.msra.mxu0 %v643
    %802 = vmatprep.mubr.f32.mxu0 %v516
    %803 = vmatmul.mubr.f32.gmra.mrb[0].mxu0 %v515
    %v804 = vpop.f32.mrb[0].mxu0
    %v805 = vadd.f32 %v658, %v804
    %v806 = vpop.f32.mrb[0].mxu0
    %v807 = vadd.f32 %v662, %v806
    %808 = vdwg.mxu0
    %v809 = vld [vmem:[#allocation17] sm:$0xf]
    %v810 = vld [vmem:[#allocation19] sm:$0xf]
    %v811 = vrot.slane %v734, 4
    %v812 = vadd.f32 %v734, %v811
    %v813 = vrot.slane %v812, 2
    %v814 = vadd.f32 %v812, %v813
    %v815 = vrot.slane %v814, 1
    %v816 = vadd.f32 %v814, %v815
    %v817 = vrot.slane %v736, 4
    %v818 = vadd.f32 %v736, %v817
    %v819 = vrot.slane %v818, 2
    %v820 = vadd.f32 %v818, %v819
    %v821 = vrot.slane %v820, 1
    %v822 = vadd.f32 %v820, %v821
    %v823 = vrot.slane %v805, 4
    %v824 = vadd.f32 %v805, %v823
    %v825 = vrot.slane %v824, 2
    %v826 = vadd.f32 %v824, %v825
    %v827 = vrot.slane %v826, 1
    %v828 = vadd.f32 %v826, %v827
    %v829 = vrot.slane %v807, 4
    %v830 = vadd.f32 %v807, %v829
    %v831 = vrot.slane %v830, 2
    %v832 = vadd.f32 %v830, %v831
    %v833 = vrot.slane %v832, 1
    %v834 = vadd.f32 %v832, %v833
    %v835 = vmul.f32 %v816, %v458
    %v836 = vmul.f32 %v822, %v458
    %v837 = vmul.f32 %v828, %v458
    %v838 = vmul.f32 %v834, %v458
    %v839 = vsub.f32 %v734, %v835
    %v840 = vsub.f32 %v736, %v836
    %v841 = vsub.f32 %v805, %v837
    %v842 = vsub.f32 %v807, %v838
    %v843 = vmul.f32 %v839, %v839
    %v844 = vmul.f32 %v840, %v840
    %v845 = vmul.f32 %v841, %v841
    %v846 = vmul.f32 %v842, %v842
    %v847 = vrot.slane %v843, 4
    %v848 = vadd.f32 %v843, %v847
    %v849 = vrot.slane %v848, 2
    %v850 = vadd.f32 %v848, %v849
    %v851 = vrot.slane %v850, 1
    %v852 = vadd.f32 %v850, %v851
    %v853 = vrot.slane %v844, 4
    %v854 = vadd.f32 %v844, %v853
    %v855 = vrot.slane %v854, 2
    %v856 = vadd.f32 %v854, %v855
    %v857 = vrot.slane %v856, 1
    %v858 = vadd.f32 %v856, %v857
    %v859 = vrot.slane %v845, 4
    %v860 = vadd.f32 %v845, %v859
    %v861 = vrot.slane %v860, 2
    %v862 = vadd.f32 %v860, %v861
    %v863 = vrot.slane %v862, 1
    %v864 = vadd.f32 %v862, %v863
    %v865 = vrot.slane %v846, 4
    %v866 = vadd.f32 %v846, %v865
    %v867 = vrot.slane %v866, 2
    %v868 = vadd.f32 %v866, %v867
    %v869 = vrot.slane %v868, 1
    %v870 = vadd.f32 %v868, %v869
    %v871 = vmul.f32 %v852, %v458
    %v872 = vmul.f32 %v858, %v458
    %v873 = vmul.f32 %v864, %v458
    %v874 = vmul.f32 %v870, %v458
    %v876 = vlaneseq
    %v877 = vshrl.u32 %v876, 7
    %v878 = vsub.s32 0, %v877
    %v879 = vrot.slane %v809, %v878
    %v880 = vlaneseq
    %v881 = vshrl.u32 %v880, 7
    %v882 = vsub.s32 1, %v881
    %v883 = vrot.slane %v809, %v882
    %v884 = vlaneseq
    %v885 = vshrl.u32 %v884, 7
    %v886 = vsub.s32 2, %v885
    %v887 = vrot.slane %v809, %v886
    %v888 = vlaneseq
    %v889 = vshrl.u32 %v888, 7
    %v890 = vsub.s32 3, %v889
    %v891 = vrot.slane %v809, %v890
    %v896 = vmul.f32 %v879, %v839
    %v897 = vmul.f32 %v883, %v840
    %v898 = vmul.f32 %v887, %v841
    %v899 = vmul.f32 %v891, %v842
    %v900 = vadd.f32 %v871, 0.9
    %v901 = vadd.f32 %v872, 0.9
    %v902 = vadd.f32 %v873, 0.9
    %v903 = vadd.f32 %v874, 0.9
    %v904 = vrsqrt.pop %v900
    %v905 = vrsqrt.pop %v901
    %v906 = vrsqrt.pop %v902
    %v907 = vrsqrt.pop %v903
    %v908 = vmul.f32 %v896, %v904
    %v909 = vmul.f32 %v897, %v905
    %v910 = vmul.f32 %v898, %v906
    %v911 = vmul.f32 %v899, %v907
    %v913 = vlaneseq
    %v914 = vshrl.u32 %v913, 7
    %v915 = vsub.s32 0, %v914
    %v916 = vrot.slane %v810, %v915
    %v917 = vlaneseq
    %v918 = vshrl.u32 %v917, 7
    %v919 = vsub.s32 1, %v918
    %v920 = vrot.slane %v810, %v919
    %v921 = vlaneseq
    %v922 = vshrl.u32 %v921, 7
    %v923 = vsub.s32 2, %v922
    %v924 = vrot.slane %v810, %v923
    %v925 = vlaneseq
    %v926 = vshrl.u32 %v925, 7
    %v927 = vsub.s32 3, %v926
    %v928 = vrot.slane %v810, %v927
    %v933 = vadd.f32 %v908, %v916
    %v934 = vadd.f32 %v909, %v920
    %v935 = vadd.f32 %v910, %v924
    %v936 = vadd.f32 %v911, %v928
    %vm937 = vcmp.ge.f32.partialorder %v933, 0.0
    %vm938 = vcmp.ge.f32.partialorder %v934, 0.0
    %vm939 = vcmp.ge.f32.partialorder %v935, 0.0
    %vm940 = vcmp.ge.f32.partialorder %v936, 0.0
    %v941 = vmul.f32 %v933, 0.2
    %v942 = vmul.f32 %v934, 0.2
    %v943 = vmul.f32 %v935, 0.2
    %v944 = vmul.f32 %v936, 0.2
    %v945 = vsel %vm937, %v933, %v941
    %v946 = vsel %vm938, %v934, %v942
    %v947 = vsel %vm939, %v935, %v943
    %v948 = vsel %vm940, %v936, %v944
    %v949 = vld [vmem:[#allocation20] sm:$0xff]
    %v950 = vld [vmem:[#allocation20 + $0x8] sm:$0xff]
    %v951 = vld [vmem:[#allocation20 + $0x10] sm:$0xff]
    %v952 = vld [vmem:[#allocation20 + $0x18] sm:$0xff]
    %v953 = vld [vmem:[#allocation20 + $0x20] sm:$0xff]
    %v954 = vld [vmem:[#allocation20 + $0x28] sm:$0xff]
    %v955 = vld [vmem:[#allocation20 + $0x30] sm:$0xff]
    %v956 = vld [vmem:[#allocation20 + $0x38] sm:$0xff]
    %v957 = vld [vmem:[#allocation20 + $0x40] sm:$0xff]
    %v958 = vld [vmem:[#allocation20 + $0x48] sm:$0xff]
    %v959 = vld [vmem:[#allocation20 + $0x50] sm:$0xff]
    %v960 = vld [vmem:[#allocation20 + $0x58] sm:$0xff]
    %v961 = vld [vmem:[#allocation20 + $0x60] sm:$0xff]
    %v962 = vld [vmem:[#allocation20 + $0x68] sm:$0xff]
    %v963 = vld [vmem:[#allocation20 + $0x70] sm:$0xff]
    %v964 = vld [vmem:[#allocation20 + $0x78] sm:$0xff]
    %v965 = vld [vmem:[#allocation20 + $0x80] sm:$0xff]
    %v966 = vld [vmem:[#allocation20 + $0x88] sm:$0xff]
    %v967 = vld [vmem:[#allocation20 + $0x90] sm:$0xff]
    %v968 = vld [vmem:[#allocation20 + $0x98] sm:$0xff]
    %v969 = vld [vmem:[#allocation20 + $0xa0] sm:$0xff]
    %v970 = vld [vmem:[#allocation20 + $0xa8] sm:$0xff]
    %v971 = vld [vmem:[#allocation20 + $0xb0] sm:$0xff]
    %v972 = vld [vmem:[#allocation20 + $0xb8] sm:$0xff]
    %v973 = vld [vmem:[#allocation20 + $0xc0] sm:$0xff]
    %v974 = vld [vmem:[#allocation20 + $0xc8] sm:$0xff]
    %v975 = vld [vmem:[#allocation20 + $0xd0] sm:$0xff]
    %v976 = vld [vmem:[#allocation20 + $0xd8] sm:$0xff]
    %v977 = vld [vmem:[#allocation20 + $0xe0] sm:$0xff]
    %v978 = vld [vmem:[#allocation20 + $0xe8] sm:$0xff]
    %v979 = vld [vmem:[#allocation20 + $0xf0] sm:$0xff]
    %v980 = vld [vmem:[#allocation20 + $0xf8] sm:$0xff]
    %v981 = vld [vmem:[#allocation20 + $0x100] sm:$0xff]
    %v982 = vld [vmem:[#allocation20 + $0x108] sm:$0xff]
    %v983 = vld [vmem:[#allocation20 + $0x110] sm:$0xff]
    %v984 = vld [vmem:[#allocation20 + $0x118] sm:$0xff]
    %v985 = vld [vmem:[#allocation20 + $0x120] sm:$0xff]
    %v986 = vld [vmem:[#allocation20 + $0x128] sm:$0xff]
    %v987 = vld [vmem:[#allocation20 + $0x130] sm:$0xff]
    %v988 = vld [vmem:[#allocation20 + $0x138] sm:$0xff]
    %v989 = vld [vmem:[#allocation20 + $0x140] sm:$0xff]
    %v990 = vld [vmem:[#allocation20 + $0x148] sm:$0xff]
    %v991 = vld [vmem:[#allocation20 + $0x150] sm:$0xff]
    %v992 = vld [vmem:[#allocation20 + $0x158] sm:$0xff]
    %v993 = vld [vmem:[#allocation20 + $0x160] sm:$0xff]
    %v994 = vld [vmem:[#allocation20 + $0x168] sm:$0xff]
    %v995 = vld [vmem:[#allocation20 + $0x170] sm:$0xff]
    %v996 = vld [vmem:[#allocation20 + $0x178] sm:$0xff]
    %v997 = vld [vmem:[#allocation20 + $0x180] sm:$0xff]
    %v998 = vld [vmem:[#allocation20 + $0x188] sm:$0xff]
    %v999 = vld [vmem:[#allocation20 + $0x190] sm:$0xff]
    %v1000 = vld [vmem:[#allocation20 + $0x198] sm:$0xff]
    %v1001 = vld [vmem:[#allocation20 + $0x1a0] sm:$0xff]
    %v1002 = vld [vmem:[#allocation20 + $0x1a8] sm:$0xff]
    %v1003 = vld [vmem:[#allocation20 + $0x1b0] sm:$0xff]
    %v1004 = vld [vmem:[#allocation20 + $0x1b8] sm:$0xff]
    %v1005 = vld [vmem:[#allocation20 + $0x1c0] sm:$0xff]
    %v1006 = vld [vmem:[#allocation20 + $0x1c8] sm:$0xff]
    %v1007 = vld [vmem:[#allocation20 + $0x1d0] sm:$0xff]
    %v1008 = vld [vmem:[#allocation20 + $0x1d8] sm:$0xff]
    %v1009 = vld [vmem:[#allocation20 + $0x1e0] sm:$0xff]
    %v1010 = vld [vmem:[#allocation20 + $0x1e8] sm:$0xff]
    %v1011 = vld [vmem:[#allocation20 + $0x1f0] sm:$0xff]
    %v1012 = vld [vmem:[#allocation20 + $0x1f8] sm:$0xff]
    %v1013 = vld [vmem:[#allocation20 + $0x200] sm:$0xff]
    %v1014 = vld [vmem:[#allocation20 + $0x208] sm:$0xff]
    %v1015 = vld [vmem:[#allocation20 + $0x210] sm:$0xff]
    %v1016 = vld [vmem:[#allocation20 + $0x218] sm:$0xff]
    %v1017 = vld [vmem:[#allocation20 + $0x220] sm:$0xff]
    %v1018 = vld [vmem:[#allocation20 + $0x228] sm:$0xff]
    %v1019 = vld [vmem:[#allocation20 + $0x230] sm:$0xff]
    %v1020 = vld [vmem:[#allocation20 + $0x238] sm:$0xff]
    %v1021 = vld [vmem:[#allocation20 + $0x240] sm:$0xff]
    %v1022 = vld [vmem:[#allocation20 + $0x248] sm:$0xff]
    %v1023 = vld [vmem:[#allocation20 + $0x250] sm:$0xff]
    %v1024 = vld [vmem:[#allocation20 + $0x258] sm:$0xff]
    %v1025 = vld [vmem:[#allocation20 + $0x260] sm:$0xff]
    %v1026 = vld [vmem:[#allocation20 + $0x268] sm:$0xff]
    %v1027 = vld [vmem:[#allocation20 + $0x270] sm:$0xff]
    %v1028 = vld [vmem:[#allocation20 + $0x278] sm:$0xff]
    %v1029 = vld [vmem:[#allocation20 + $0x280] sm:$0xff]
    %v1030 = vld [vmem:[#allocation20 + $0x288] sm:$0xff]
    %v1031 = vld [vmem:[#allocation20 + $0x290] sm:$0xff]
    %v1032 = vld [vmem:[#allocation20 + $0x298] sm:$0xff]
    %v1033 = vld [vmem:[#allocation20 + $0x2a0] sm:$0xff]
    %v1034 = vld [vmem:[#allocation20 + $0x2a8] sm:$0xff]
    %v1035 = vld [vmem:[#allocation20 + $0x2b0] sm:$0xff]
    %v1036 = vld [vmem:[#allocation20 + $0x2b8] sm:$0xff]
    %v1037 = vld [vmem:[#allocation20 + $0x2c0] sm:$0xff]
    %v1038 = vld [vmem:[#allocation20 + $0x2c8] sm:$0xff]
    %v1039 = vld [vmem:[#allocation20 + $0x2d0] sm:$0xff]
    %v1040 = vld [vmem:[#allocation20 + $0x2d8] sm:$0xff]
    %v1041 = vld [vmem:[#allocation20 + $0x2e0] sm:$0xff]
    %v1042 = vld [vmem:[#allocation20 + $0x2e8] sm:$0xff]
    %v1043 = vld [vmem:[#allocation20 + $0x2f0] sm:$0xff]
    %v1044 = vld [vmem:[#allocation20 + $0x2f8] sm:$0xff]
    %v1045 = vld [vmem:[#allocation20 + $0x300] sm:$0xff]
    %v1046 = vld [vmem:[#allocation20 + $0x308] sm:$0xff]
    %v1047 = vld [vmem:[#allocation20 + $0x310] sm:$0xff]
    %v1048 = vld [vmem:[#allocation20 + $0x318] sm:$0xff]
    %v1049 = vld [vmem:[#allocation20 + $0x320] sm:$0xff]
    %v1050 = vld [vmem:[#allocation20 + $0x328] sm:$0xff]
    %v1051 = vld [vmem:[#allocation20 + $0x330] sm:$0xff]
    %v1052 = vld [vmem:[#allocation20 + $0x338] sm:$0xff]
    %v1053 = vld [vmem:[#allocation20 + $0x340] sm:$0xff]
    %v1054 = vld [vmem:[#allocation20 + $0x348] sm:$0xff]
    %v1055 = vld [vmem:[#allocation20 + $0x350] sm:$0xff]
    %v1056 = vld [vmem:[#allocation20 + $0x358] sm:$0xff]
    %v1057 = vld [vmem:[#allocation20 + $0x360] sm:$0xff]
    %v1058 = vld [vmem:[#allocation20 + $0x368] sm:$0xff]
    %v1059 = vld [vmem:[#allocation20 + $0x370] sm:$0xff]
    %v1060 = vld [vmem:[#allocation20 + $0x378] sm:$0xff]
    %v1061 = vld [vmem:[#allocation20 + $0x380] sm:$0xff]
    %v1062 = vld [vmem:[#allocation20 + $0x388] sm:$0xff]
    %v1063 = vld [vmem:[#allocation20 + $0x390] sm:$0xff]
    %v1064 = vld [vmem:[#allocation20 + $0x398] sm:$0xff]
    %v1065 = vld [vmem:[#allocation20 + $0x3a0] sm:$0xff]
    %v1066 = vld [vmem:[#allocation20 + $0x3a8] sm:$0xff]
    %v1067 = vld [vmem:[#allocation20 + $0x3b0] sm:$0xff]
    %v1068 = vld [vmem:[#allocation20 + $0x3b8] sm:$0xff]
    %v1069 = vld [vmem:[#allocation20 + $0x3c0] sm:$0xff]
    %v1070 = vld [vmem:[#allocation20 + $0x3c8] sm:$0xff]
    %v1071 = vld [vmem:[#allocation20 + $0x3d0] sm:$0xff]
    %v1072 = vld [vmem:[#allocation20 + $0x3d8] sm:$0xff]
    %v1073 = vld [vmem:[#allocation20 + $0x3e0] sm:$0xff]
    %v1074 = vld [vmem:[#allocation20 + $0x3e8] sm:$0xff]
    %v1075 = vld [vmem:[#allocation20 + $0x3f0] sm:$0xff]
    %v1076 = vld [vmem:[#allocation20 + $0x3f8] sm:$0xff]
    %v1077 = vld [vmem:[#allocation20 + $0x400] sm:$0xff]
    %v1078 = vld [vmem:[#allocation20 + $0x408] sm:$0xff]
    %v1079 = vld [vmem:[#allocation20 + $0x410] sm:$0xff]
    %v1080 = vld [vmem:[#allocation20 + $0x418] sm:$0xff]
    %v1081 = vld [vmem:[#allocation20 + $0x420] sm:$0xff]
    %v1082 = vld [vmem:[#allocation20 + $0x428] sm:$0xff]
    %v1083 = vld [vmem:[#allocation20 + $0x430] sm:$0xff]
    %v1084 = vld [vmem:[#allocation20 + $0x438] sm:$0xff]
    %v1085 = vld [vmem:[#allocation20 + $0x440] sm:$0xff]
    %v1086 = vld [vmem:[#allocation20 + $0x448] sm:$0xff]
    %v1087 = vld [vmem:[#allocation20 + $0x450] sm:$0xff]
    %v1088 = vld [vmem:[#allocation20 + $0x458] sm:$0xff]
    %v1089 = vld [vmem:[#allocation20 + $0x460] sm:$0xff]
    %v1090 = vld [vmem:[#allocation20 + $0x468] sm:$0xff]
    %v1091 = vld [vmem:[#allocation20 + $0x470] sm:$0xff]
    %v1092 = vld [vmem:[#allocation20 + $0x478] sm:$0xff]
    %v1093 = vld [vmem:[#allocation20 + $0x480] sm:$0xff]
    %v1094 = vld [vmem:[#allocation20 + $0x488] sm:$0xff]
    %v1095 = vld [vmem:[#allocation20 + $0x490] sm:$0xff]
    %v1096 = vld [vmem:[#allocation20 + $0x498] sm:$0xff]
    %v1097 = vld [vmem:[#allocation20 + $0x4a0] sm:$0xff]
    %v1098 = vld [vmem:[#allocation20 + $0x4a8] sm:$0xff]
    %v1099 = vld [vmem:[#allocation20 + $0x4b0] sm:$0xff]
    %v1100 = vld [vmem:[#allocation20 + $0x4b8] sm:$0xff]
    %v1101 = vld [vmem:[#allocation20 + $0x4c0] sm:$0xff]
    %v1102 = vld [vmem:[#allocation20 + $0x4c8] sm:$0xff]
    %v1103 = vld [vmem:[#allocation20 + $0x4d0] sm:$0xff]
    %v1104 = vld [vmem:[#allocation20 + $0x4d8] sm:$0xff]
    %v1105 = vld [vmem:[#allocation20 + $0x4e0] sm:$0xff]
    %v1106 = vld [vmem:[#allocation20 + $0x4e8] sm:$0xff]
    %v1107 = vld [vmem:[#allocation20 + $0x4f0] sm:$0xff]
    %v1108 = vld [vmem:[#allocation20 + $0x4f8] sm:$0xff]
    %v1109 = vld [vmem:[#allocation20 + $0x500] sm:$0xff]
    %v1110 = vld [vmem:[#allocation20 + $0x508] sm:$0xff]
    %v1111 = vld [vmem:[#allocation20 + $0x510] sm:$0xff]
    %v1112 = vld [vmem:[#allocation20 + $0x518] sm:$0xff]
    %v1113 = vld [vmem:[#allocation20 + $0x520] sm:$0xff]
    %v1114 = vld [vmem:[#allocation20 + $0x528] sm:$0xff]
    %v1115 = vld [vmem:[#allocation20 + $0x530] sm:$0xff]
    %v1116 = vld [vmem:[#allocation20 + $0x538] sm:$0xff]
    %v1117 = vld [vmem:[#allocation20 + $0x540] sm:$0xff]
    %v1118 = vld [vmem:[#allocation20 + $0x548] sm:$0xff]
    %v1119 = vld [vmem:[#allocation20 + $0x550] sm:$0xff]
    %v1120 = vld [vmem:[#allocation20 + $0x558] sm:$0xff]
    %v1121 = vld [vmem:[#allocation20 + $0x560] sm:$0xff]
    %v1122 = vld [vmem:[#allocation20 + $0x568] sm:$0xff]
    %v1123 = vld [vmem:[#allocation20 + $0x570] sm:$0xff]
    %v1124 = vld [vmem:[#allocation20 + $0x578] sm:$0xff]
    %v1125 = vld [vmem:[#allocation20 + $0x580] sm:$0xff]
    %v1126 = vld [vmem:[#allocation20 + $0x588] sm:$0xff]
    %v1127 = vld [vmem:[#allocation20 + $0x590] sm:$0xff]
    %v1128 = vld [vmem:[#allocation20 + $0x598] sm:$0xff]
    %v1129 = vld [vmem:[#allocation20 + $0x5a0] sm:$0xff]
    %v1130 = vld [vmem:[#allocation20 + $0x5a8] sm:$0xff]
    %v1131 = vld [vmem:[#allocation20 + $0x5b0] sm:$0xff]
    %v1132 = vld [vmem:[#allocation20 + $0x5b8] sm:$0xff]
    %v1133 = vld [vmem:[#allocation20 + $0x5c0] sm:$0xff]
    %v1134 = vld [vmem:[#allocation20 + $0x5c8] sm:$0xff]
    %v1135 = vld [vmem:[#allocation20 + $0x5d0] sm:$0xff]
    %v1136 = vld [vmem:[#allocation20 + $0x5d8] sm:$0xff]
    %v1137 = vld [vmem:[#allocation20 + $0x5e0] sm:$0xff]
    %v1138 = vld [vmem:[#allocation20 + $0x5e8] sm:$0xff]
    %v1139 = vld [vmem:[#allocation20 + $0x5f0] sm:$0xff]
    %v1140 = vld [vmem:[#allocation20 + $0x5f8] sm:$0xff]
    %v1141 = vld [vmem:[#allocation20 + $0x600] sm:$0xff]
    %v1142 = vld [vmem:[#allocation20 + $0x608] sm:$0xff]
    %v1143 = vld [vmem:[#allocation20 + $0x610] sm:$0xff]
    %v1144 = vld [vmem:[#allocation20 + $0x618] sm:$0xff]
    %v1145 = vld [vmem:[#allocation20 + $0x620] sm:$0xff]
    %v1146 = vld [vmem:[#allocation20 + $0x628] sm:$0xff]
    %v1147 = vld [vmem:[#allocation20 + $0x630] sm:$0xff]
    %v1148 = vld [vmem:[#allocation20 + $0x638] sm:$0xff]
    %v1149 = vld [vmem:[#allocation20 + $0x640] sm:$0xff]
    %v1150 = vld [vmem:[#allocation20 + $0x648] sm:$0xff]
    %v1151 = vld [vmem:[#allocation20 + $0x650] sm:$0xff]
    %v1152 = vld [vmem:[#allocation20 + $0x658] sm:$0xff]
    %v1153 = vld [vmem:[#allocation20 + $0x660] sm:$0xff]
    %v1154 = vld [vmem:[#allocation20 + $0x668] sm:$0xff]
    %v1155 = vld [vmem:[#allocation20 + $0x670] sm:$0xff]
    %v1156 = vld [vmem:[#allocation20 + $0x678] sm:$0xff]
    %v1157 = vld [vmem:[#allocation20 + $0x680] sm:$0xff]
    %v1158 = vld [vmem:[#allocation20 + $0x688] sm:$0xff]
    %v1159 = vld [vmem:[#allocation20 + $0x690] sm:$0xff]
    %v1160 = vld [vmem:[#allocation20 + $0x698] sm:$0xff]
    %v1161 = vld [vmem:[#allocation20 + $0x6a0] sm:$0xff]
    %v1162 = vld [vmem:[#allocation20 + $0x6a8] sm:$0xff]
    %v1163 = vld [vmem:[#allocation20 + $0x6b0] sm:$0xff]
    %v1164 = vld [vmem:[#allocation20 + $0x6b8] sm:$0xff]
    %v1165 = vld [vmem:[#allocation20 + $0x6c0] sm:$0xff]
    %v1166 = vld [vmem:[#allocation20 + $0x6c8] sm:$0xff]
    %v1167 = vld [vmem:[#allocation20 + $0x6d0] sm:$0xff]
    %v1168 = vld [vmem:[#allocation20 + $0x6d8] sm:$0xff]
    %v1169 = vld [vmem:[#allocation20 + $0x6e0] sm:$0xff]
    %v1170 = vld [vmem:[#allocation20 + $0x6e8] sm:$0xff]
    %v1171 = vld [vmem:[#allocation20 + $0x6f0] sm:$0xff]
    %v1172 = vld [vmem:[#allocation20 + $0x6f8] sm:$0xff]
    %v1173 = vld [vmem:[#allocation20 + $0x700] sm:$0xff]
    %v1174 = vld [vmem:[#allocation20 + $0x708] sm:$0xff]
    %v1175 = vld [vmem:[#allocation20 + $0x710] sm:$0xff]
    %v1176 = vld [vmem:[#allocation20 + $0x718] sm:$0xff]
    %v1177 = vld [vmem:[#allocation20 + $0x720] sm:$0xff]
    %v1178 = vld [vmem:[#allocation20 + $0x728] sm:$0xff]
    %v1179 = vld [vmem:[#allocation20 + $0x730] sm:$0xff]
    %v1180 = vld [vmem:[#allocation20 + $0x738] sm:$0xff]
    %v1181 = vld [vmem:[#allocation20 + $0x740] sm:$0xff]
    %v1182 = vld [vmem:[#allocation20 + $0x748] sm:$0xff]
    %v1183 = vld [vmem:[#allocation20 + $0x750] sm:$0xff]
    %v1184 = vld [vmem:[#allocation20 + $0x758] sm:$0xff]
    %v1185 = vld [vmem:[#allocation20 + $0x760] sm:$0xff]
    %v1186 = vld [vmem:[#allocation20 + $0x768] sm:$0xff]
    %v1187 = vld [vmem:[#allocation20 + $0x770] sm:$0xff]
    %v1188 = vld [vmem:[#allocation20 + $0x778] sm:$0xff]
    %v1189 = vld [vmem:[#allocation20 + $0x780] sm:$0xff]
    %v1190 = vld [vmem:[#allocation20 + $0x788] sm:$0xff]
    %v1191 = vld [vmem:[#allocation20 + $0x790] sm:$0xff]
    %v1192 = vld [vmem:[#allocation20 + $0x798] sm:$0xff]
    %v1193 = vld [vmem:[#allocation20 + $0x7a0] sm:$0xff]
    %v1194 = vld [vmem:[#allocation20 + $0x7a8] sm:$0xff]
    %v1195 = vld [vmem:[#allocation20 + $0x7b0] sm:$0xff]
    %v1196 = vld [vmem:[#allocation20 + $0x7b8] sm:$0xff]
    %v1197 = vld [vmem:[#allocation20 + $0x7c0] sm:$0xff]
    %v1198 = vld [vmem:[#allocation20 + $0x7c8] sm:$0xff]
    %v1199 = vld [vmem:[#allocation20 + $0x7d0] sm:$0xff]
    %v1200 = vld [vmem:[#allocation20 + $0x7d8] sm:$0xff]
    %v1201 = vld [vmem:[#allocation20 + $0x7e0] sm:$0xff]
    %v1202 = vld [vmem:[#allocation20 + $0x7e8] sm:$0xff]
    %v1203 = vld [vmem:[#allocation20 + $0x7f0] sm:$0xff]
    %v1204 = vld [vmem:[#allocation20 + $0x7f8] sm:$0xff]
    %v1205 = vld [vmem:[#allocation20 + $0x800] sm:$0xff]
    %v1206 = vld [vmem:[#allocation20 + $0x808] sm:$0xff]
    %v1207 = vld [vmem:[#allocation20 + $0x810] sm:$0xff]
    %v1208 = vld [vmem:[#allocation20 + $0x818] sm:$0xff]
    %v1209 = vld [vmem:[#allocation20 + $0x820] sm:$0xff]
    %v1210 = vld [vmem:[#allocation20 + $0x828] sm:$0xff]
    %v1211 = vld [vmem:[#allocation20 + $0x830] sm:$0xff]
    %v1212 = vld [vmem:[#allocation20 + $0x838] sm:$0xff]
    %v1213 = vld [vmem:[#allocation20 + $0x840] sm:$0xff]
    %v1214 = vld [vmem:[#allocation20 + $0x848] sm:$0xff]
    %v1215 = vld [vmem:[#allocation20 + $0x850] sm:$0xff]
    %v1216 = vld [vmem:[#allocation20 + $0x858] sm:$0xff]
    %v1217 = vld [vmem:[#allocation20 + $0x860] sm:$0xff]
    %v1218 = vld [vmem:[#allocation20 + $0x868] sm:$0xff]
    %v1219 = vld [vmem:[#allocation20 + $0x870] sm:$0xff]
    %v1220 = vld [vmem:[#allocation20 + $0x878] sm:$0xff]
    %v1221 = vld [vmem:[#allocation20 + $0x880] sm:$0xff]
    %v1222 = vld [vmem:[#allocation20 + $0x888] sm:$0xff]
    %v1223 = vld [vmem:[#allocation20 + $0x890] sm:$0xff]
    %v1224 = vld [vmem:[#allocation20 + $0x898] sm:$0xff]
    %v1225 = vld [vmem:[#allocation20 + $0x8a0] sm:$0xff]
    %v1226 = vld [vmem:[#allocation20 + $0x8a8] sm:$0xff]
    %v1227 = vld [vmem:[#allocation20 + $0x8b0] sm:$0xff]
    %v1228 = vld [vmem:[#allocation20 + $0x8b8] sm:$0xff]
    %v1229 = vld [vmem:[#allocation20 + $0x8c0] sm:$0xff]
    %v1230 = vld [vmem:[#allocation20 + $0x8c8] sm:$0xff]
    %v1231 = vld [vmem:[#allocation20 + $0x8d0] sm:$0xff]
    %v1232 = vld [vmem:[#allocation20 + $0x8d8] sm:$0xff]
    %v1233 = vld [vmem:[#allocation20 + $0x8e0] sm:$0xff]
    %v1234 = vld [vmem:[#allocation20 + $0x8e8] sm:$0xff]
    %v1235 = vld [vmem:[#allocation20 + $0x8f0] sm:$0xff]
    %v1236 = vld [vmem:[#allocation20 + $0x8f8] sm:$0xff]
    %v1237 = vld [vmem:[#allocation20 + $0x900] sm:$0xff]
    %v1238 = vld [vmem:[#allocation20 + $0x908] sm:$0xff]
    %v1239 = vld [vmem:[#allocation20 + $0x910] sm:$0xff]
    %v1240 = vld [vmem:[#allocation20 + $0x918] sm:$0xff]
    %v1241 = vld [vmem:[#allocation20 + $0x920] sm:$0xff]
    %v1242 = vld [vmem:[#allocation20 + $0x928] sm:$0xff]
    %v1243 = vld [vmem:[#allocation20 + $0x930] sm:$0xff]
    %v1244 = vld [vmem:[#allocation20 + $0x938] sm:$0xff]
    %v1245 = vld [vmem:[#allocation20 + $0x940] sm:$0xff]
    %v1246 = vld [vmem:[#allocation20 + $0x948] sm:$0xff]
    %v1247 = vld [vmem:[#allocation20 + $0x950] sm:$0xff]
    %v1248 = vld [vmem:[#allocation20 + $0x958] sm:$0xff]
    %v1249 = vld [vmem:[#allocation20 + $0x960] sm:$0xff]
    %v1250 = vld [vmem:[#allocation20 + $0x968] sm:$0xff]
    %v1251 = vld [vmem:[#allocation20 + $0x970] sm:$0xff]
    %v1252 = vld [vmem:[#allocation20 + $0x978] sm:$0xff]
    %v1253 = vld [vmem:[#allocation20 + $0x980] sm:$0xff]
    %v1254 = vld [vmem:[#allocation20 + $0x988] sm:$0xff]
    %v1255 = vld [vmem:[#allocation20 + $0x990] sm:$0xff]
    %v1256 = vld [vmem:[#allocation20 + $0x998] sm:$0xff]
    %v1257 = vld [vmem:[#allocation20 + $0x9a0] sm:$0xff]
    %v1258 = vld [vmem:[#allocation20 + $0x9a8] sm:$0xff]
    %v1259 = vld [vmem:[#allocation20 + $0x9b0] sm:$0xff]
    %v1260 = vld [vmem:[#allocation20 + $0x9b8] sm:$0xff]
    %v1261 = vld [vmem:[#allocation20 + $0x9c0] sm:$0xff]
    %v1262 = vld [vmem:[#allocation20 + $0x9c8] sm:$0xff]
    %v1263 = vld [vmem:[#allocation20 + $0x9d0] sm:$0xff]
    %v1264 = vld [vmem:[#allocation20 + $0x9d8] sm:$0xff]
    %v1265 = vld [vmem:[#allocation20 + $0x9e0] sm:$0xff]
    %v1266 = vld [vmem:[#allocation20 + $0x9e8] sm:$0xff]
    %v1267 = vld [vmem:[#allocation20 + $0x9f0] sm:$0xff]
    %v1268 = vld [vmem:[#allocation20 + $0x9f8] sm:$0xff]
    %v1269 = vld [vmem:[#allocation20 + $0xa00] sm:$0xff]
    %v1270 = vld [vmem:[#allocation20 + $0xa08] sm:$0xff]
    %v1271 = vld [vmem:[#allocation20 + $0xa10] sm:$0xff]
    %v1272 = vld [vmem:[#allocation20 + $0xa18] sm:$0xff]
    %v1273 = vld [vmem:[#allocation20 + $0xa20] sm:$0xff]
    %v1274 = vld [vmem:[#allocation20 + $0xa28] sm:$0xff]
    %v1275 = vld [vmem:[#allocation20 + $0xa30] sm:$0xff]
    %v1276 = vld [vmem:[#allocation20 + $0xa38] sm:$0xff]
    %v1277 = vld [vmem:[#allocation20 + $0xa40] sm:$0xff]
    %v1278 = vld [vmem:[#allocation20 + $0xa48] sm:$0xff]
    %v1279 = vld [vmem:[#allocation20 + $0xa50] sm:$0xff]
    %v1280 = vld [vmem:[#allocation20 + $0xa58] sm:$0xff]
    %v1281 = vld [vmem:[#allocation20 + $0xa60] sm:$0xff]
    %v1282 = vld [vmem:[#allocation20 + $0xa68] sm:$0xff]
    %v1283 = vld [vmem:[#allocation20 + $0xa70] sm:$0xff]
    %v1284 = vld [vmem:[#allocation20 + $0xa78] sm:$0xff]
    %v1285 = vld [vmem:[#allocation20 + $0xa80] sm:$0xff]
    %v1286 = vld [vmem:[#allocation20 + $0xa88] sm:$0xff]
    %v1287 = vld [vmem:[#allocation20 + $0xa90] sm:$0xff]
    %v1288 = vld [vmem:[#allocation20 + $0xa98] sm:$0xff]
    %v1289 = vld [vmem:[#allocation20 + $0xaa0] sm:$0xff]
    %v1290 = vld [vmem:[#allocation20 + $0xaa8] sm:$0xff]
    %v1291 = vld [vmem:[#allocation20 + $0xab0] sm:$0xff]
    %v1292 = vld [vmem:[#allocation20 + $0xab8] sm:$0xff]
    %v1293 = vld [vmem:[#allocation20 + $0xac0] sm:$0xff]
    %v1294 = vld [vmem:[#allocation20 + $0xac8] sm:$0xff]
    %v1295 = vld [vmem:[#allocation20 + $0xad0] sm:$0xff]
    %v1296 = vld [vmem:[#allocation20 + $0xad8] sm:$0xff]
    %v1297 = vld [vmem:[#allocation20 + $0xae0] sm:$0xff]
    %v1298 = vld [vmem:[#allocation20 + $0xae8] sm:$0xff]
    %v1299 = vld [vmem:[#allocation20 + $0xaf0] sm:$0xff]
    %v1300 = vld [vmem:[#allocation20 + $0xaf8] sm:$0xff]
    %v1301 = vld [vmem:[#allocation20 + $0xb00] sm:$0xff]
    %v1302 = vld [vmem:[#allocation20 + $0xb08] sm:$0xff]
    %v1303 = vld [vmem:[#allocation20 + $0xb10] sm:$0xff]
    %v1304 = vld [vmem:[#allocation20 + $0xb18] sm:$0xff]
    %v1305 = vld [vmem:[#allocation20 + $0xb20] sm:$0xff]
    %v1306 = vld [vmem:[#allocation20 + $0xb28] sm:$0xff]
    %v1307 = vld [vmem:[#allocation20 + $0xb30] sm:$0xff]
    %v1308 = vld [vmem:[#allocation20 + $0xb38] sm:$0xff]
    %v1309 = vld [vmem:[#allocation20 + $0xb40] sm:$0xff]
    %v1310 = vld [vmem:[#allocation20 + $0xb48] sm:$0xff]
    %v1311 = vld [vmem:[#allocation20 + $0xb50] sm:$0xff]
    %v1312 = vld [vmem:[#allocation20 + $0xb58] sm:$0xff]
    %v1313 = vld [vmem:[#allocation20 + $0xb60] sm:$0xff]
    %v1314 = vld [vmem:[#allocation20 + $0xb68] sm:$0xff]
    %v1315 = vld [vmem:[#allocation20 + $0xb70] sm:$0xff]
    %v1316 = vld [vmem:[#allocation20 + $0xb78] sm:$0xff]
    %v1317 = vld [vmem:[#allocation20 + $0xb80] sm:$0xff]
    %v1318 = vld [vmem:[#allocation20 + $0xb88] sm:$0xff]
    %v1319 = vld [vmem:[#allocation20 + $0xb90] sm:$0xff]
    %v1320 = vld [vmem:[#allocation20 + $0xb98] sm:$0xff]
    %v1321 = vld [vmem:[#allocation20 + $0xba0] sm:$0xff]
    %v1322 = vld [vmem:[#allocation20 + $0xba8] sm:$0xff]
    %v1323 = vld [vmem:[#allocation20 + $0xbb0] sm:$0xff]
    %v1324 = vld [vmem:[#allocation20 + $0xbb8] sm:$0xff]
    %v1325 = vld [vmem:[#allocation20 + $0xbc0] sm:$0xff]
    %v1326 = vld [vmem:[#allocation20 + $0xbc8] sm:$0xff]
    %v1327 = vld [vmem:[#allocation20 + $0xbd0] sm:$0xff]
    %v1328 = vld [vmem:[#allocation20 + $0xbd8] sm:$0xff]
    %v1329 = vld [vmem:[#allocation20 + $0xbe0] sm:$0xff]
    %v1330 = vld [vmem:[#allocation20 + $0xbe8] sm:$0xff]
    %v1331 = vld [vmem:[#allocation20 + $0xbf0] sm:$0xff]
    %v1332 = vld [vmem:[#allocation20 + $0xbf8] sm:$0xff]
    %v1333 = vld [vmem:[#allocation20 + $0xc00] sm:$0xff]
    %v1334 = vld [vmem:[#allocation20 + $0xc08] sm:$0xff]
    %v1335 = vld [vmem:[#allocation20 + $0xc10] sm:$0xff]
    %v1336 = vld [vmem:[#allocation20 + $0xc18] sm:$0xff]
    %v1337 = vld [vmem:[#allocation20 + $0xc20] sm:$0xff]
    %v1338 = vld [vmem:[#allocation20 + $0xc28] sm:$0xff]
    %v1339 = vld [vmem:[#allocation20 + $0xc30] sm:$0xff]
    %v1340 = vld [vmem:[#allocation20 + $0xc38] sm:$0xff]
    %v1341 = vld [vmem:[#allocation20 + $0xc40] sm:$0xff]
    %v1342 = vld [vmem:[#allocation20 + $0xc48] sm:$0xff]
    %v1343 = vld [vmem:[#allocation20 + $0xc50] sm:$0xff]
    %v1344 = vld [vmem:[#allocation20 + $0xc58] sm:$0xff]
    %v1345 = vld [vmem:[#allocation20 + $0xc60] sm:$0xff]
    %v1346 = vld [vmem:[#allocation20 + $0xc68] sm:$0xff]
    %v1347 = vld [vmem:[#allocation20 + $0xc70] sm:$0xff]
    %v1348 = vld [vmem:[#allocation20 + $0xc78] sm:$0xff]
    %v1349 = vld [vmem:[#allocation20 + $0xc80] sm:$0xff]
    %v1350 = vld [vmem:[#allocation20 + $0xc88] sm:$0xff]
    %v1351 = vld [vmem:[#allocation20 + $0xc90] sm:$0xff]
    %v1352 = vld [vmem:[#allocation20 + $0xc98] sm:$0xff]
    %v1353 = vld [vmem:[#allocation20 + $0xca0] sm:$0xff]
    %v1354 = vld [vmem:[#allocation20 + $0xca8] sm:$0xff]
    %v1355 = vld [vmem:[#allocation20 + $0xcb0] sm:$0xff]
    %v1356 = vld [vmem:[#allocation20 + $0xcb8] sm:$0xff]
    %v1357 = vld [vmem:[#allocation20 + $0xcc0] sm:$0xff]
    %v1358 = vld [vmem:[#allocation20 + $0xcc8] sm:$0xff]
    %v1359 = vld [vmem:[#allocation20 + $0xcd0] sm:$0xff]
    %v1360 = vld [vmem:[#allocation20 + $0xcd8] sm:$0xff]
    %v1361 = vld [vmem:[#allocation20 + $0xce0] sm:$0xff]
    %v1362 = vld [vmem:[#allocation20 + $0xce8] sm:$0xff]
    %v1363 = vld [vmem:[#allocation20 + $0xcf0] sm:$0xff]
    %v1364 = vld [vmem:[#allocation20 + $0xcf8] sm:$0xff]
    %v1365 = vld [vmem:[#allocation20 + $0xd00] sm:$0xff]
    %v1366 = vld [vmem:[#allocation20 + $0xd08] sm:$0xff]
    %v1367 = vld [vmem:[#allocation20 + $0xd10] sm:$0xff]
    %v1368 = vld [vmem:[#allocation20 + $0xd18] sm:$0xff]
    %v1369 = vld [vmem:[#allocation20 + $0xd20] sm:$0xff]
    %v1370 = vld [vmem:[#allocation20 + $0xd28] sm:$0xff]
    %v1371 = vld [vmem:[#allocation20 + $0xd30] sm:$0xff]
    %v1372 = vld [vmem:[#allocation20 + $0xd38] sm:$0xff]
    %v1373 = vld [vmem:[#allocation20 + $0xd40] sm:$0xff]
    %v1374 = vld [vmem:[#allocation20 + $0xd48] sm:$0xff]
    %v1375 = vld [vmem:[#allocation20 + $0xd50] sm:$0xff]
    %v1376 = vld [vmem:[#allocation20 + $0xd58] sm:$0xff]
    %v1377 = vld [vmem:[#allocation20 + $0xd60] sm:$0xff]
    %v1378 = vld [vmem:[#allocation20 + $0xd68] sm:$0xff]
    %v1379 = vld [vmem:[#allocation20 + $0xd70] sm:$0xff]
    %v1380 = vld [vmem:[#allocation20 + $0xd78] sm:$0xff]
    %v1381 = vld [vmem:[#allocation20 + $0xd80] sm:$0xff]
    %v1382 = vld [vmem:[#allocation20 + $0xd88] sm:$0xff]
    %v1383 = vld [vmem:[#allocation20 + $0xd90] sm:$0xff]
    %v1384 = vld [vmem:[#allocation20 + $0xd98] sm:$0xff]
    %v1385 = vld [vmem:[#allocation20 + $0xda0] sm:$0xff]
    %v1386 = vld [vmem:[#allocation20 + $0xda8] sm:$0xff]
    %v1387 = vld [vmem:[#allocation20 + $0xdb0] sm:$0xff]
    %v1388 = vld [vmem:[#allocation20 + $0xdb8] sm:$0xff]
    %v1389 = vld [vmem:[#allocation20 + $0xdc0] sm:$0xff]
    %v1390 = vld [vmem:[#allocation20 + $0xdc8] sm:$0xff]
    %v1391 = vld [vmem:[#allocation20 + $0xdd0] sm:$0xff]
    %v1392 = vld [vmem:[#allocation20 + $0xdd8] sm:$0xff]
    %v1393 = vld [vmem:[#allocation20 + $0xde0] sm:$0xff]
    %v1394 = vld [vmem:[#allocation20 + $0xde8] sm:$0xff]
    %v1395 = vld [vmem:[#allocation20 + $0xdf0] sm:$0xff]
    %v1396 = vld [vmem:[#allocation20 + $0xdf8] sm:$0xff]
    %v1397 = vld [vmem:[#allocation20 + $0xe00] sm:$0xff]
    %v1398 = vld [vmem:[#allocation20 + $0xe08] sm:$0xff]
    %v1399 = vld [vmem:[#allocation20 + $0xe10] sm:$0xff]
    %v1400 = vld [vmem:[#allocation20 + $0xe18] sm:$0xff]
    %v1401 = vld [vmem:[#allocation20 + $0xe20] sm:$0xff]
    %v1402 = vld [vmem:[#allocation20 + $0xe28] sm:$0xff]
    %v1403 = vld [vmem:[#allocation20 + $0xe30] sm:$0xff]
    %v1404 = vld [vmem:[#allocation20 + $0xe38] sm:$0xff]
    %v1405 = vld [vmem:[#allocation20 + $0xe40] sm:$0xff]
    %v1406 = vld [vmem:[#allocation20 + $0xe48] sm:$0xff]
    %v1407 = vld [vmem:[#allocation20 + $0xe50] sm:$0xff]
    %v1408 = vld [vmem:[#allocation20 + $0xe58] sm:$0xff]
    %v1409 = vld [vmem:[#allocation20 + $0xe60] sm:$0xff]
    %v1410 = vld [vmem:[#allocation20 + $0xe68] sm:$0xff]
    %v1411 = vld [vmem:[#allocation20 + $0xe70] sm:$0xff]
    %v1412 = vld [vmem:[#allocation20 + $0xe78] sm:$0xff]
    %v1413 = vld [vmem:[#allocation20 + $0xe80] sm:$0xff]
    %v1414 = vld [vmem:[#allocation20 + $0xe88] sm:$0xff]
    %v1415 = vld [vmem:[#allocation20 + $0xe90] sm:$0xff]
    %v1416 = vld [vmem:[#allocation20 + $0xe98] sm:$0xff]
    %v1417 = vld [vmem:[#allocation20 + $0xea0] sm:$0xff]
    %v1418 = vld [vmem:[#allocation20 + $0xea8] sm:$0xff]
    %v1419 = vld [vmem:[#allocation20 + $0xeb0] sm:$0xff]
    %v1420 = vld [vmem:[#allocation20 + $0xeb8] sm:$0xff]
    %v1421 = vld [vmem:[#allocation20 + $0xec0] sm:$0xff]
    %v1422 = vld [vmem:[#allocation20 + $0xec8] sm:$0xff]
    %v1423 = vld [vmem:[#allocation20 + $0xed0] sm:$0xff]
    %v1424 = vld [vmem:[#allocation20 + $0xed8] sm:$0xff]
    %v1425 = vld [vmem:[#allocation20 + $0xee0] sm:$0xff]
    %v1426 = vld [vmem:[#allocation20 + $0xee8] sm:$0xff]
    %v1427 = vld [vmem:[#allocation20 + $0xef0] sm:$0xff]
    %v1428 = vld [vmem:[#allocation20 + $0xef8] sm:$0xff]
    %v1429 = vld [vmem:[#allocation20 + $0xf00] sm:$0xff]
    %v1430 = vld [vmem:[#allocation20 + $0xf08] sm:$0xff]
    %v1431 = vld [vmem:[#allocation20 + $0xf10] sm:$0xff]
    %v1432 = vld [vmem:[#allocation20 + $0xf18] sm:$0xff]
    %v1433 = vld [vmem:[#allocation20 + $0xf20] sm:$0xff]
    %v1434 = vld [vmem:[#allocation20 + $0xf28] sm:$0xff]
    %v1435 = vld [vmem:[#allocation20 + $0xf30] sm:$0xff]
    %v1436 = vld [vmem:[#allocation20 + $0xf38] sm:$0xff]
    %v1437 = vld [vmem:[#allocation20 + $0xf40] sm:$0xff]
    %v1438 = vld [vmem:[#allocation20 + $0xf48] sm:$0xff]
    %v1439 = vld [vmem:[#allocation20 + $0xf50] sm:$0xff]
    %v1440 = vld [vmem:[#allocation20 + $0xf58] sm:$0xff]
    %v1441 = vld [vmem:[#allocation20 + $0xf60] sm:$0xff]
    %v1442 = vld [vmem:[#allocation20 + $0xf68] sm:$0xff]
    %v1443 = vld [vmem:[#allocation20 + $0xf70] sm:$0xff]
    %v1444 = vld [vmem:[#allocation20 + $0xf78] sm:$0xff]
    %v1445 = vld [vmem:[#allocation20 + $0xf80] sm:$0xff]
    %v1446 = vld [vmem:[#allocation20 + $0xf88] sm:$0xff]
    %v1447 = vld [vmem:[#allocation20 + $0xf90] sm:$0xff]
    %v1448 = vld [vmem:[#allocation20 + $0xf98] sm:$0xff]
    %v1449 = vld [vmem:[#allocation20 + $0xfa0] sm:$0xff]
    %v1450 = vld [vmem:[#allocation20 + $0xfa8] sm:$0xff]
    %v1451 = vld [vmem:[#allocation20 + $0xfb0] sm:$0xff]
    %v1452 = vld [vmem:[#allocation20 + $0xfb8] sm:$0xff]
    %v1453 = vld [vmem:[#allocation20 + $0xfc0] sm:$0xff]
    %v1454 = vld [vmem:[#allocation20 + $0xfc8] sm:$0xff]
    %v1455 = vld [vmem:[#allocation20 + $0xfd0] sm:$0xff]
    %v1456 = vld [vmem:[#allocation20 + $0xfd8] sm:$0xff]
    %v1457 = vld [vmem:[#allocation20 + $0xfe0] sm:$0xff]
    %v1458 = vld [vmem:[#allocation20 + $0xfe8] sm:$0xff]
    %v1459 = vld [vmem:[#allocation20 + $0xff0] sm:$0xff]
    %v1460 = vld [vmem:[#allocation20 + $0xff8] sm:$0xff]
    %v1461 = vld [vmem:[#allocation22] sm:$0xff]
    %v1463 = vlaneseq
    %v1464 = vshrl.u32 %v1463, 7
    %v1465 = vsub.s32 0, %v1464
    %v1466 = vrot.slane %v1461, %v1465
    %v1467 = vlaneseq
    %v1468 = vshrl.u32 %v1467, 7
    %v1469 = vsub.s32 1, %v1468
    %v1470 = vrot.slane %v1461, %v1469
    %v1471 = vlaneseq
    %v1472 = vshrl.u32 %v1471, 7
    %v1473 = vsub.s32 2, %v1472
    %v1474 = vrot.slane %v1461, %v1473
    %v1475 = vlaneseq
    %v1476 = vshrl.u32 %v1475, 7
    %v1477 = vsub.s32 3, %v1476
    %v1478 = vrot.slane %v1461, %v1477
    %v1479 = vlaneseq
    %v1480 = vshrl.u32 %v1479, 7
    %v1481 = vsub.s32 4, %v1480
    %v1482 = vrot.slane %v1461, %v1481
    %v1483 = vlaneseq
    %v1484 = vshrl.u32 %v1483, 7
    %v1485 = vsub.s32 5, %v1484
    %v1486 = vrot.slane %v1461, %v1485
    %v1487 = vlaneseq
    %v1488 = vshrl.u32 %v1487, 7
    %v1489 = vsub.s32 6, %v1488
    %v1490 = vrot.slane %v1461, %v1489
    %v1491 = vlaneseq
    %v1492 = vshrl.u32 %v1491, 7
    %v1493 = vsub.s32 7, %v1492
    %v1494 = vrot.slane %v1461, %v1493
    %1503 = vmatprep.subr.mxu0 %v950
    %1504 = vmatpush1.msra.mxu0 %v949
    %1505 = vmatprep.subr.mxu0 %v958
    %1506 = vmatpush1.msra.mxu0 %v957
    %1507 = vmatprep.subr.mxu0 %v966
    %1508 = vmatpush1.msra.mxu0 %v965
    %1509 = vmatprep.subr.mxu0 %v974
    %1510 = vmatpush1.msra.mxu0 %v973
    %1511 = vmatprep.subr.mxu0 %v982
    %1512 = vmatpush1.msra.mxu0 %v981
    %1513 = vmatprep.subr.mxu0 %v990
    %1514 = vmatpush1.msra.mxu0 %v989
    %1515 = vmatprep.subr.mxu0 %v998
    %1516 = vmatpush1.msra.mxu0 %v997
    %1517 = vmatprep.subr.mxu0 %v1006
    %1518 = vmatpush1.msra.mxu0 %v1005
    %1519 = vmatprep.subr.mxu0 %v1014
    %1520 = vmatpush1.msra.mxu0 %v1013
    %1521 = vmatprep.subr.mxu0 %v1022
    %1522 = vmatpush1.msra.mxu0 %v1021
    %1523 = vmatprep.subr.mxu0 %v1030
    %1524 = vmatpush1.msra.mxu0 %v1029
    %1525 = vmatprep.subr.mxu0 %v1038
    %1526 = vmatpush1.msra.mxu0 %v1037
    %1527 = vmatprep.subr.mxu0 %v1046
    %1528 = vmatpush1.msra.mxu0 %v1045
    %1529 = vmatprep.subr.mxu0 %v1054
    %1530 = vmatpush1.msra.mxu0 %v1053
    %1531 = vmatprep.subr.mxu0 %v1062
    %1532 = vmatpush1.msra.mxu0 %v1061
    %1533 = vmatprep.subr.mxu0 %v1070
    %1534 = vmatpush1.msra.mxu0 %v1069
    %1535 = vmatprep.subr.mxu0 %v1078
    %1536 = vmatpush1.msra.mxu0 %v1077
    %1537 = vmatprep.subr.mxu0 %v1086
    %1538 = vmatpush1.msra.mxu0 %v1085
    %1539 = vmatprep.subr.mxu0 %v1094
    %1540 = vmatpush1.msra.mxu0 %v1093
    %1541 = vmatprep.subr.mxu0 %v1102
    %1542 = vmatpush1.msra.mxu0 %v1101
    %1543 = vmatprep.subr.mxu0 %v1110
    %1544 = vmatpush1.msra.mxu0 %v1109
    %1545 = vmatprep.subr.mxu0 %v1118
    %1546 = vmatpush1.msra.mxu0 %v1117
    %1547 = vmatprep.subr.mxu0 %v1126
    %1548 = vmatpush1.msra.mxu0 %v1125
    %1549 = vmatprep.subr.mxu0 %v1134
    %1550 = vmatpush1.msra.mxu0 %v1133
    %1551 = vmatprep.subr.mxu0 %v1142
    %1552 = vmatpush1.msra.mxu0 %v1141
    %1553 = vmatprep.subr.mxu0 %v1150
    %1554 = vmatpush1.msra.mxu0 %v1149
    %1555 = vmatprep.subr.mxu0 %v1158
    %1556 = vmatpush1.msra.mxu0 %v1157
    %1557 = vmatprep.subr.mxu0 %v1166
    %1558 = vmatpush1.msra.mxu0 %v1165
    %1559 = vmatprep.subr.mxu0 %v1174
    %1560 = vmatpush1.msra.mxu0 %v1173
    %1561 = vmatprep.subr.mxu0 %v1182
    %1562 = vmatpush1.msra.mxu0 %v1181
    %1563 = vmatprep.subr.mxu0 %v1190
    %1564 = vmatpush1.msra.mxu0 %v1189
    %1565 = vmatprep.subr.mxu0 %v1198
    %1566 = vmatpush1.msra.mxu0 %v1197
    %1567 = vmatprep.mubr.f32.mxu0 %v946
    %1568 = vmatmul.mubr.f32.gmra.mrb[0].mxu0 %v945
    %v1569 = vpop.f32.mrb[0].mxu0
    %v1570 = vadd.f32 %v1466, %v1569
    %v1571 = vpop.f32.mrb[0].mxu0
    %v1572 = vadd.f32 %v1470, %v1571
    %1573 = vdwg.mxu0
    %1574 = vmatprep.subr.mxu0 %v1206
    %1575 = vmatpush1.msra.mxu0 %v1205
    %1576 = vmatprep.subr.mxu0 %v1214
    %1577 = vmatpush1.msra.mxu0 %v1213
    %1578 = vmatprep.subr.mxu0 %v1222
    %1579 = vmatpush1.msra.mxu0 %v1221
    %1580 = vmatprep.subr.mxu0 %v1230
    %1581 = vmatpush1.msra.mxu0 %v1229
    %1582 = vmatprep.subr.mxu0 %v1238
    %1583 = vmatpush1.msra.mxu0 %v1237
    %1584 = vmatprep.subr.mxu0 %v1246
    %1585 = vmatpush1.msra.mxu0 %v1245
    %1586 = vmatprep.subr.mxu0 %v1254
    %1587 = vmatpush1.msra.mxu0 %v1253
    %1588 = vmatprep.subr.mxu0 %v1262
    %1589 = vmatpush1.msra.mxu0 %v1261
    %1590 = vmatprep.subr.mxu0 %v1270
    %1591 = vmatpush1.msra.mxu0 %v1269
    %1592 = vmatprep.subr.mxu0 %v1278
    %1593 = vmatpush1.msra.mxu0 %v1277
    %1594 = vmatprep.subr.mxu0 %v1286
    %1595 = vmatpush1.msra.mxu0 %v1285
    %1596 = vmatprep.subr.mxu0 %v1294
    %1597 = vmatpush1.msra.mxu0 %v1293
    %1598 = vmatprep.subr.mxu0 %v1302
    %1599 = vmatpush1.msra.mxu0 %v1301
    %1600 = vmatprep.subr.mxu0 %v1310
    %1601 = vmatpush1.msra.mxu0 %v1309
    %1602 = vmatprep.subr.mxu0 %v1318
    %1603 = vmatpush1.msra.mxu0 %v1317
    %1604 = vmatprep.subr.mxu0 %v1326
    %1605 = vmatpush1.msra.mxu0 %v1325
    %1606 = vmatprep.subr.mxu0 %v1334
    %1607 = vmatpush1.msra.mxu0 %v1333
    %1608 = vmatprep.subr.mxu0 %v1342
    %1609 = vmatpush1.msra.mxu0 %v1341
    %1610 = vmatprep.subr.mxu0 %v1350
    %1611 = vmatpush1.msra.mxu0 %v1349
    %1612 = vmatprep.subr.mxu0 %v1358
    %1613 = vmatpush1.msra.mxu0 %v1357
    %1614 = vmatprep.subr.mxu0 %v1366
    %1615 = vmatpush1.msra.mxu0 %v1365
    %1616 = vmatprep.subr.mxu0 %v1374
    %1617 = vmatpush1.msra.mxu0 %v1373
    %1618 = vmatprep.subr.mxu0 %v1382
    %1619 = vmatpush1.msra.mxu0 %v1381
    %1620 = vmatprep.subr.mxu0 %v1390
    %1621 = vmatpush1.msra.mxu0 %v1389
    %1622 = vmatprep.subr.mxu0 %v1398
    %1623 = vmatpush1.msra.mxu0 %v1397
    %1624 = vmatprep.subr.mxu0 %v1406
    %1625 = vmatpush1.msra.mxu0 %v1405
    %1626 = vmatprep.subr.mxu0 %v1414
    %1627 = vmatpush1.msra.mxu0 %v1413
    %1628 = vmatprep.subr.mxu0 %v1422
    %1629 = vmatpush1.msra.mxu0 %v1421
    %1630 = vmatprep.subr.mxu0 %v1430
    %1631 = vmatpush1.msra.mxu0 %v1429
    %1632 = vmatprep.subr.mxu0 %v1438
    %1633 = vmatpush1.msra.mxu0 %v1437
    %1634 = vmatprep.subr.mxu0 %v1446
    %1635 = vmatpush1.msra.mxu0 %v1445
    %1636 = vmatprep.subr.mxu0 %v1454
    %1637 = vmatpush1.msra.mxu0 %v1453
    %1638 = vmatprep.mubr.f32.mxu0 %v948
    %1639 = vmatmul.mubr.f32.gmra.mrb[0].mxu0 %v947
    %v1640 = vpop.f32.mrb[0].mxu0
    %v1641 = vadd.f32 %v1570, %v1640
    %v1642 = vpop.f32.mrb[0].mxu0
    %v1643 = vadd.f32 %v1572, %v1642
    %1644 = vdwg.mxu0
    %1645 = vmatprep.subr.mxu0 %v952
    %1646 = vmatpush1.msra.mxu0 %v951
    %1647 = vmatprep.subr.mxu0 %v960
    %1648 = vmatpush1.msra.mxu0 %v959
    %1649 = vmatprep.subr.mxu0 %v968
    %1650 = vmatpush1.msra.mxu0 %v967
    %1651 = vmatprep.subr.mxu0 %v976
    %1652 = vmatpush1.msra.mxu0 %v975
    %1653 = vmatprep.subr.mxu0 %v984
    %1654 = vmatpush1.msra.mxu0 %v983
    %1655 = vmatprep.subr.mxu0 %v992
    %1656 = vmatpush1.msra.mxu0 %v991
    %1657 = vmatprep.subr.mxu0 %v1000
    %1658 = vmatpush1.msra.mxu0 %v999
    %1659 = vmatprep.subr.mxu0 %v1008
    %1660 = vmatpush1.msra.mxu0 %v1007
    %1661 = vmatprep.subr.mxu0 %v1016
    %1662 = vmatpush1.msra.mxu0 %v1015
    %1663 = vmatprep.subr.mxu0 %v1024
    %1664 = vmatpush1.msra.mxu0 %v1023
    %1665 = vmatprep.subr.mxu0 %v1032
    %1666 = vmatpush1.msra.mxu0 %v1031
    %1667 = vmatprep.subr.mxu0 %v1040
    %1668 = vmatpush1.msra.mxu0 %v1039
    %1669 = vmatprep.subr.mxu0 %v1048
    %1670 = vmatpush1.msra.mxu0 %v1047
    %1671 = vmatprep.subr.mxu0 %v1056
    %1672 = vmatpush1.msra.mxu0 %v1055
    %1673 = vmatprep.subr.mxu0 %v1064
    %1674 = vmatpush1.msra.mxu0 %v1063
    %1675 = vmatprep.subr.mxu0 %v1072
    %1676 = vmatpush1.msra.mxu0 %v1071
    %1677 = vmatprep.subr.mxu0 %v1080
    %1678 = vmatpush1.msra.mxu0 %v1079
    %1679 = vmatprep.subr.mxu0 %v1088
    %1680 = vmatpush1.msra.mxu0 %v1087
    %1681 = vmatprep.subr.mxu0 %v1096
    %1682 = vmatpush1.msra.mxu0 %v1095
    %1683 = vmatprep.subr.mxu0 %v1104
    %1684 = vmatpush1.msra.mxu0 %v1103
    %1685 = vmatprep.subr.mxu0 %v1112
    %1686 = vmatpush1.msra.mxu0 %v1111
    %1687 = vmatprep.subr.mxu0 %v1120
    %1688 = vmatpush1.msra.mxu0 %v1119
    %1689 = vmatprep.subr.mxu0 %v1128
    %1690 = vmatpush1.msra.mxu0 %v1127
    %1691 = vmatprep.subr.mxu0 %v1136
    %1692 = vmatpush1.msra.mxu0 %v1135
    %1693 = vmatprep.subr.mxu0 %v1144
    %1694 = vmatpush1.msra.mxu0 %v1143
    %1695 = vmatprep.subr.mxu0 %v1152
    %1696 = vmatpush1.msra.mxu0 %v1151
    %1697 = vmatprep.subr.mxu0 %v1160
    %1698 = vmatpush1.msra.mxu0 %v1159
    %1699 = vmatprep.subr.mxu0 %v1168
    %1700 = vmatpush1.msra.mxu0 %v1167
    %1701 = vmatprep.subr.mxu0 %v1176
    %1702 = vmatpush1.msra.mxu0 %v1175
    %1703 = vmatprep.subr.mxu0 %v1184
    %1704 = vmatpush1.msra.mxu0 %v1183
    %1705 = vmatprep.subr.mxu0 %v1192
    %1706 = vmatpush1.msra.mxu0 %v1191
    %1707 = vmatprep.subr.mxu0 %v1200
    %1708 = vmatpush1.msra.mxu0 %v1199
    %1709 = vmatprep.mubr.f32.mxu0 %v946
    %1710 = vmatmul.mubr.f32.gmra.mrb[0].mxu0 %v945
    %v1711 = vpop.f32.mrb[0].mxu0
    %v1712 = vadd.f32 %v1474, %v1711
    %v1713 = vpop.f32.mrb[0].mxu0
    %v1714 = vadd.f32 %v1478, %v1713
    %1715 = vdwg.mxu0
    %1716 = vmatprep.subr.mxu0 %v1208
    %1717 = vmatpush1.msra.mxu0 %v1207
    %1718 = vmatprep.subr.mxu0 %v1216
    %1719 = vmatpush1.msra.mxu0 %v1215
    %1720 = vmatprep.subr.mxu0 %v1224
    %1721 = vmatpush1.msra.mxu0 %v1223
    %1722 = vmatprep.subr.mxu0 %v1232
    %1723 = vmatpush1.msra.mxu0 %v1231
    %1724 = vmatprep.subr.mxu0 %v1240
    %1725 = vmatpush1.msra.mxu0 %v1239
    %1726 = vmatprep.subr.mxu0 %v1248
    %1727 = vmatpush1.msra.mxu0 %v1247
    %1728 = vmatprep.subr.mxu0 %v1256
    %1729 = vmatpush1.msra.mxu0 %v1255
    %1730 = vmatprep.subr.mxu0 %v1264
    %1731 = vmatpush1.msra.mxu0 %v1263
    %1732 = vmatprep.subr.mxu0 %v1272
    %1733 = vmatpush1.msra.mxu0 %v1271
    %1734 = vmatprep.subr.mxu0 %v1280
    %1735 = vmatpush1.msra.mxu0 %v1279
    %1736 = vmatprep.subr.mxu0 %v1288
    %1737 = vmatpush1.msra.mxu0 %v1287
    %1738 = vmatprep.subr.mxu0 %v1296
    %1739 = vmatpush1.msra.mxu0 %v1295
    %1740 = vmatprep.subr.mxu0 %v1304
    %1741 = vmatpush1.msra.mxu0 %v1303
    %1742 = vmatprep.subr.mxu0 %v1312
    %1743 = vmatpush1.msra.mxu0 %v1311
    %1744 = vmatprep.subr.mxu0 %v1320
    %1745 = vmatpush1.msra.mxu0 %v1319
    %1746 = vmatprep.subr.mxu0 %v1328
    %1747 = vmatpush1.msra.mxu0 %v1327
    %1748 = vmatprep.subr.mxu0 %v1336
    %1749 = vmatpush1.msra.mxu0 %v1335
    %1750 = vmatprep.subr.mxu0 %v1344
    %1751 = vmatpush1.msra.mxu0 %v1343
    %1752 = vmatprep.subr.mxu0 %v1352
    %1753 = vmatpush1.msra.mxu0 %v1351
    %1754 = vmatprep.subr.mxu0 %v1360
    %1755 = vmatpush1.msra.mxu0 %v1359
    %1756 = vmatprep.subr.mxu0 %v1368
    %1757 = vmatpush1.msra.mxu0 %v1367
    %1758 = vmatprep.subr.mxu0 %v1376
    %1759 = vmatpush1.msra.mxu0 %v1375
    %1760 = vmatprep.subr.mxu0 %v1384
    %1761 = vmatpush1.msra.mxu0 %v1383
    %1762 = vmatprep.subr.mxu0 %v1392
    %1763 = vmatpush1.msra.mxu0 %v1391
    %1764 = vmatprep.subr.mxu0 %v1400
    %1765 = vmatpush1.msra.mxu0 %v1399
    %1766 = vmatprep.subr.mxu0 %v1408
    %1767 = vmatpush1.msra.mxu0 %v1407
    %1768 = vmatprep.subr.mxu0 %v1416
    %1769 = vmatpush1.msra.mxu0 %v1415
    %1770 = vmatprep.subr.mxu0 %v1424
    %1771 = vmatpush1.msra.mxu0 %v1423
    %1772 = vmatprep.subr.mxu0 %v1432
    %1773 = vmatpush1.msra.mxu0 %v1431
    %1774 = vmatprep.subr.mxu0 %v1440
    %1775 = vmatpush1.msra.mxu0 %v1439
    %1776 = vmatprep.subr.mxu0 %v1448
    %1777 = vmatpush1.msra.mxu0 %v1447
    %1778 = vmatprep.subr.mxu0 %v1456
    %1779 = vmatpush1.msra.mxu0 %v1455
    %1780 = vmatprep.mubr.f32.mxu0 %v948
    %1781 = vmatmul.mubr.f32.gmra.mrb[0].mxu0 %v947
    %v1782 = vpop.f32.mrb[0].mxu0
    %v1783 = vadd.f32 %v1712, %v1782
    %v1784 = vpop.f32.mrb[0].mxu0
    %v1785 = vadd.f32 %v1714, %v1784
    %1786 = vdwg.mxu0
    %1787 = vmatprep.subr.mxu0 %v954
    %1788 = vmatpush1.msra.mxu0 %v953
    %1789 = vmatprep.subr.mxu0 %v962
    %1790 = vmatpush1.msra.mxu0 %v961
    %1791 = vmatprep.subr.mxu0 %v970
    %1792 = vmatpush1.msra.mxu0 %v969
    %1793 = vmatprep.subr.mxu0 %v978
    %1794 = vmatpush1.msra.mxu0 %v977
    %1795 = vmatprep.subr.mxu0 %v986
    %1796 = vmatpush1.msra.mxu0 %v985
    %1797 = vmatprep.subr.mxu0 %v994
    %1798 = vmatpush1.msra.mxu0 %v993
    %1799 = vmatprep.subr.mxu0 %v1002
    %1800 = vmatpush1.msra.mxu0 %v1001
    %1801 = vmatprep.subr.mxu0 %v1010
    %1802 = vmatpush1.msra.mxu0 %v1009
    %1803 = vmatprep.subr.mxu0 %v1018
    %1804 = vmatpush1.msra.mxu0 %v1017
    %1805 = vmatprep.subr.mxu0 %v1026
    %1806 = vmatpush1.msra.mxu0 %v1025
    %1807 = vmatprep.subr.mxu0 %v1034
    %1808 = vmatpush1.msra.mxu0 %v1033
    %1809 = vmatprep.subr.mxu0 %v1042
    %1810 = vmatpush1.msra.mxu0 %v1041
    %1811 = vmatprep.subr.mxu0 %v1050
    %1812 = vmatpush1.msra.mxu0 %v1049
    %1813 = vmatprep.subr.mxu0 %v1058
    %1814 = vmatpush1.msra.mxu0 %v1057
    %1815 = vmatprep.subr.mxu0 %v1066
    %1816 = vmatpush1.msra.mxu0 %v1065
    %1817 = vmatprep.subr.mxu0 %v1074
    %1818 = vmatpush1.msra.mxu0 %v1073
    %1819 = vmatprep.subr.mxu0 %v1082
    %1820 = vmatpush1.msra.mxu0 %v1081
    %1821 = vmatprep.subr.mxu0 %v1090
    %1822 = vmatpush1.msra.mxu0 %v1089
    %1823 = vmatprep.subr.mxu0 %v1098
    %1824 = vmatpush1.msra.mxu0 %v1097
    %1825 = vmatprep.subr.mxu0 %v1106
    %1826 = vmatpush1.msra.mxu0 %v1105
    %1827 = vmatprep.subr.mxu0 %v1114
    %1828 = vmatpush1.msra.mxu0 %v1113
    %1829 = vmatprep.subr.mxu0 %v1122
    %1830 = vmatpush1.msra.mxu0 %v1121
    %1831 = vmatprep.subr.mxu0 %v1130
    %1832 = vmatpush1.msra.mxu0 %v1129
    %1833 = vmatprep.subr.mxu0 %v1138
    %1834 = vmatpush1.msra.mxu0 %v1137
    %1835 = vmatprep.subr.mxu0 %v1146
    %1836 = vmatpush1.msra.mxu0 %v1145
    %1837 = vmatprep.subr.mxu0 %v1154
    %1838 = vmatpush1.msra.mxu0 %v1153
    %1839 = vmatprep.subr.mxu0 %v1162
    %1840 = vmatpush1.msra.mxu0 %v1161
    %1841 = vmatprep.subr.mxu0 %v1170
    %1842 = vmatpush1.msra.mxu0 %v1169
    %1843 = vmatprep.subr.mxu0 %v1178
    %1844 = vmatpush1.msra.mxu0 %v1177
    %1845 = vmatprep.subr.mxu0 %v1186
    %1846 = vmatpush1.msra.mxu0 %v1185
    %1847 = vmatprep.subr.mxu0 %v1194
    %1848 = vmatpush1.msra.mxu0 %v1193
    %1849 = vmatprep.subr.mxu0 %v1202
    %1850 = vmatpush1.msra.mxu0 %v1201
    %1851 = vmatprep.mubr.f32.mxu0 %v946
    %1852 = vmatmul.mubr.f32.gmra.mrb[0].mxu0 %v945
    %v1853 = vpop.f32.mrb[0].mxu0
    %v1854 = vadd.f32 %v1482, %v1853
    %v1855 = vpop.f32.mrb[0].mxu0
    %v1856 = vadd.f32 %v1486, %v1855
    %1857 = vdwg.mxu0
    %1858 = vmatprep.subr.mxu0 %v1210
    %1859 = vmatpush1.msra.mxu0 %v1209
    %1860 = vmatprep.subr.mxu0 %v1218
    %1861 = vmatpush1.msra.mxu0 %v1217
    %1862 = vmatprep.subr.mxu0 %v1226
    %1863 = vmatpush1.msra.mxu0 %v1225
    %1864 = vmatprep.subr.mxu0 %v1234
    %1865 = vmatpush1.msra.mxu0 %v1233
    %1866 = vmatprep.subr.mxu0 %v1242
    %1867 = vmatpush1.msra.mxu0 %v1241
    %1868 = vmatprep.subr.mxu0 %v1250
    %1869 = vmatpush1.msra.mxu0 %v1249
    %1870 = vmatprep.subr.mxu0 %v1258
    %1871 = vmatpush1.msra.mxu0 %v1257
    %1872 = vmatprep.subr.mxu0 %v1266
    %1873 = vmatpush1.msra.mxu0 %v1265
    %1874 = vmatprep.subr.mxu0 %v1274
    %1875 = vmatpush1.msra.mxu0 %v1273
    %1876 = vmatprep.subr.mxu0 %v1282
    %1877 = vmatpush1.msra.mxu0 %v1281
    %1878 = vmatprep.subr.mxu0 %v1290
    %1879 = vmatpush1.msra.mxu0 %v1289
    %1880 = vmatprep.subr.mxu0 %v1298
    %1881 = vmatpush1.msra.mxu0 %v1297
    %1882 = vmatprep.subr.mxu0 %v1306
    %1883 = vmatpush1.msra.mxu0 %v1305
    %1884 = vmatprep.subr.mxu0 %v1314
    %1885 = vmatpush1.msra.mxu0 %v1313
    %1886 = vmatprep.subr.mxu0 %v1322
    %1887 = vmatpush1.msra.mxu0 %v1321
    %1888 = vmatprep.subr.mxu0 %v1330
    %1889 = vmatpush1.msra.mxu0 %v1329
    %1890 = vmatprep.subr.mxu0 %v1338
    %1891 = vmatpush1.msra.mxu0 %v1337
    %1892 = vmatprep.subr.mxu0 %v1346
    %1893 = vmatpush1.msra.mxu0 %v1345
    %1894 = vmatprep.subr.mxu0 %v1354
    %1895 = vmatpush1.msra.mxu0 %v1353
    %1896 = vmatprep.subr.mxu0 %v1362
    %1897 = vmatpush1.msra.mxu0 %v1361
    %1898 = vmatprep.subr.mxu0 %v1370
    %1899 = vmatpush1.msra.mxu0 %v1369
    %1900 = vmatprep.subr.mxu0 %v1378
    %1901 = vmatpush1.msra.mxu0 %v1377
    %1902 = vmatprep.subr.mxu0 %v1386
    %1903 = vmatpush1.msra.mxu0 %v1385
    %1904 = vmatprep.subr.mxu0 %v1394
    %1905 = vmatpush1.msra.mxu0 %v1393
    %1906 = vmatprep.subr.mxu0 %v1402
    %1907 = vmatpush1.msra.mxu0 %v1401
    %1908 = vmatprep.subr.mxu0 %v1410
    %1909 = vmatpush1.msra.mxu0 %v1409
    %1910 = vmatprep.subr.mxu0 %v1418
    %1911 = vmatpush1.msra.mxu0 %v1417
    %1912 = vmatprep.subr.mxu0 %v1426
    %1913 = vmatpush1.msra.mxu0 %v1425
    %1914 = vmatprep.subr.mxu0 %v1434
    %1915 = vmatpush1.msra.mxu0 %v1433
    %1916 = vmatprep.subr.mxu0 %v1442
    %1917 = vmatpush1.msra.mxu0 %v1441
    %1918 = vmatprep.subr.mxu0 %v1450
    %1919 = vmatpush1.msra.mxu0 %v1449
    %1920 = vmatprep.subr.mxu0 %v1458
    %1921 = vmatpush1.msra.mxu0 %v1457
    %1922 = vmatprep.mubr.f32.mxu0 %v948
    %1923 = vmatmul.mubr.f32.gmra.mrb[0].mxu0 %v947
    %v1924 = vpop.f32.mrb[0].mxu0
    %v1925 = vadd.f32 %v1854, %v1924
    %v1926 = vpop.f32.mrb[0].mxu0
    %v1927 = vadd.f32 %v1856, %v1926
    %1928 = vdwg.mxu0
    %1929 = vmatprep.subr.mxu0 %v956
    %1930 = vmatpush1.msra.mxu0 %v955
    %1931 = vmatprep.subr.mxu0 %v964
    %1932 = vmatpush1.msra.mxu0 %v963
    %1933 = vmatprep.subr.mxu0 %v972
    %1934 = vmatpush1.msra.mxu0 %v971
    %1935 = vmatprep.subr.mxu0 %v980
    %1936 = vmatpush1.msra.mxu0 %v979
    %1937 = vmatprep.subr.mxu0 %v988
    %1938 = vmatpush1.msra.mxu0 %v987
    %1939 = vmatprep.subr.mxu0 %v996
    %1940 = vmatpush1.msra.mxu0 %v995
    %1941 = vmatprep.subr.mxu0 %v1004
    %1942 = vmatpush1.msra.mxu0 %v1003
    %1943 = vmatprep.subr.mxu0 %v1012
    %1944 = vmatpush1.msra.mxu0 %v1011
    %1945 = vmatprep.subr.mxu0 %v1020
    %1946 = vmatpush1.msra.mxu0 %v1019
    %1947 = vmatprep.subr.mxu0 %v1028
    %1948 = vmatpush1.msra.mxu0 %v1027
    %1949 = vmatprep.subr.mxu0 %v1036
    %1950 = vmatpush1.msra.mxu0 %v1035
    %1951 = vmatprep.subr.mxu0 %v1044
    %1952 = vmatpush1.msra.mxu0 %v1043
    %1953 = vmatprep.subr.mxu0 %v1052
    %1954 = vmatpush1.msra.mxu0 %v1051
    %1955 = vmatprep.subr.mxu0 %v1060
    %1956 = vmatpush1.msra.mxu0 %v1059
    %1957 = vmatprep.subr.mxu0 %v1068
    %1958 = vmatpush1.msra.mxu0 %v1067
    %1959 = vmatprep.subr.mxu0 %v1076
    %1960 = vmatpush1.msra.mxu0 %v1075
    %1961 = vmatprep.subr.mxu0 %v1084
    %1962 = vmatpush1.msra.mxu0 %v1083
    %1963 = vmatprep.subr.mxu0 %v1092
    %1964 = vmatpush1.msra.mxu0 %v1091
    %1965 = vmatprep.subr.mxu0 %v1100
    %1966 = vmatpush1.msra.mxu0 %v1099
    %1967 = vmatprep.subr.mxu0 %v1108
    %1968 = vmatpush1.msra.mxu0 %v1107
    %1969 = vmatprep.subr.mxu0 %v1116
    %1970 = vmatpush1.msra.mxu0 %v1115
    %1971 = vmatprep.subr.mxu0 %v1124
    %1972 = vmatpush1.msra.mxu0 %v1123
    %1973 = vmatprep.subr.mxu0 %v1132
    %1974 = vmatpush1.msra.mxu0 %v1131
    %1975 = vmatprep.subr.mxu0 %v1140
    %1976 = vmatpush1.msra.mxu0 %v1139
    %1977 = vmatprep.subr.mxu0 %v1148
    %1978 = vmatpush1.msra.mxu0 %v1147
    %1979 = vmatprep.subr.mxu0 %v1156
    %1980 = vmatpush1.msra.mxu0 %v1155
    %1981 = vmatprep.subr.mxu0 %v1164
    %1982 = vmatpush1.msra.mxu0 %v1163
    %1983 = vmatprep.subr.mxu0 %v1172
    %1984 = vmatpush1.msra.mxu0 %v1171
    %1985 = vmatprep.subr.mxu0 %v1180
    %1986 = vmatpush1.msra.mxu0 %v1179
    %1987 = vmatprep.subr.mxu0 %v1188
    %1988 = vmatpush1.msra.mxu0 %v1187
    %1989 = vmatprep.subr.mxu0 %v1196
    %1990 = vmatpush1.msra.mxu0 %v1195
    %1991 = vmatprep.subr.mxu0 %v1204
    %1992 = vmatpush1.msra.mxu0 %v1203
    %1993 = vmatprep.mubr.f32.mxu0 %v946
    %1994 = vmatmul.mubr.f32.gmra.mrb[0].mxu0 %v945
    %v1995 = vpop.f32.mrb[0].mxu0
    %v1996 = vadd.f32 %v1490, %v1995
    %v1997 = vpop.f32.mrb[0].mxu0
    %v1998 = vadd.f32 %v1494, %v1997
    %1999 = vdwg.mxu0
    %2000 = vmatprep.subr.mxu0 %v1212
    %2001 = vmatpush1.msra.mxu0 %v1211
    %2002 = vmatprep.subr.mxu0 %v1220
    %2003 = vmatpush1.msra.mxu0 %v1219
    %2004 = vmatprep.subr.mxu0 %v1228
    %2005 = vmatpush1.msra.mxu0 %v1227
    %2006 = vmatprep.subr.mxu0 %v1236
    %2007 = vmatpush1.msra.mxu0 %v1235
    %2008 = vmatprep.subr.mxu0 %v1244
    %2009 = vmatpush1.msra.mxu0 %v1243
    %2010 = vmatprep.subr.mxu0 %v1252
    %2011 = vmatpush1.msra.mxu0 %v1251
    %2012 = vmatprep.subr.mxu0 %v1260
    %2013 = vmatpush1.msra.mxu0 %v1259
    %2014 = vmatprep.subr.mxu0 %v1268
    %2015 = vmatpush1.msra.mxu0 %v1267
    %2016 = vmatprep.subr.mxu0 %v1276
    %2017 = vmatpush1.msra.mxu0 %v1275
    %2018 = vmatprep.subr.mxu0 %v1284
    %2019 = vmatpush1.msra.mxu0 %v1283
    %2020 = vmatprep.subr.mxu0 %v1292
    %2021 = vmatpush1.msra.mxu0 %v1291
    %2022 = vmatprep.subr.mxu0 %v1300
    %2023 = vmatpush1.msra.mxu0 %v1299
    %2024 = vmatprep.subr.mxu0 %v1308
    %2025 = vmatpush1.msra.mxu0 %v1307
    %2026 = vmatprep.subr.mxu0 %v1316
    %2027 = vmatpush1.msra.mxu0 %v1315
    %2028 = vmatprep.subr.mxu0 %v1324
    %2029 = vmatpush1.msra.mxu0 %v1323
    %2030 = vmatprep.subr.mxu0 %v1332
    %2031 = vmatpush1.msra.mxu0 %v1331
    %2032 = vmatprep.subr.mxu0 %v1340
    %2033 = vmatpush1.msra.mxu0 %v1339
    %2034 = vmatprep.subr.mxu0 %v1348
    %2035 = vmatpush1.msra.mxu0 %v1347
    %2036 = vmatprep.subr.mxu0 %v1356
    %2037 = vmatpush1.msra.mxu0 %v1355
    %2038 = vmatprep.subr.mxu0 %v1364
    %2039 = vmatpush1.msra.mxu0 %v1363
    %2040 = vmatprep.subr.mxu0 %v1372
    %2041 = vmatpush1.msra.mxu0 %v1371
    %2042 = vmatprep.subr.mxu0 %v1380
    %2043 = vmatpush1.msra.mxu0 %v1379
    %2044 = vmatprep.subr.mxu0 %v1388
    %2045 = vmatpush1.msra.mxu0 %v1387
    %2046 = vmatprep.subr.mxu0 %v1396
    %2047 = vmatpush1.msra.mxu0 %v1395
    %2048 = vmatprep.subr.mxu0 %v1404
    %2049 = vmatpush1.msra.mxu0 %v1403
    %2050 = vmatprep.subr.mxu0 %v1412
    %2051 = vmatpush1.msra.mxu0 %v1411
    %2052 = vmatprep.subr.mxu0 %v1420
    %2053 = vmatpush1.msra.mxu0 %v1419
    %2054 = vmatprep.subr.mxu0 %v1428
    %2055 = vmatpush1.msra.mxu0 %v1427
    %2056 = vmatprep.subr.mxu0 %v1436
    %2057 = vmatpush1.msra.mxu0 %v1435
    %2058 = vmatprep.subr.mxu0 %v1444
    %2059 = vmatpush1.msra.mxu0 %v1443
    %2060 = vmatprep.subr.mxu0 %v1452
    %2061 = vmatpush1.msra.mxu0 %v1451
    %2062 = vmatprep.subr.mxu0 %v1460
    %2063 = vmatpush1.msra.mxu0 %v1459
    %2064 = vmatprep.mubr.f32.mxu0 %v948
    %2065 = vmatmul.mubr.f32.gmra.mrb[0].mxu0 %v947
    %v2066 = vpop.f32.mrb[0].mxu0
    %v2067 = vadd.f32 %v1996, %v2066
    %v2068 = vpop.f32.mrb[0].mxu0
    %v2069 = vadd.f32 %v1998, %v2068
    %2070 = vdwg.mxu0
    %v2071 = vld [vmem:[#allocation23] sm:$0xff]
    %v2072 = vld [vmem:[#allocation25] sm:$0xff]
    %v2073 = vrot.slane %v1641, 4
    %v2074 = vadd.f32 %v1641, %v2073
    %v2075 = vrot.slane %v2074, 2
    %v2076 = vadd.f32 %v2074, %v2075
    %v2077 = vrot.slane %v2076, 1
    %v2078 = vadd.f32 %v2076, %v2077
    %v2079 = vrot.slane %v1643, 4
    %v2080 = vadd.f32 %v1643, %v2079
    %v2081 = vrot.slane %v2080, 2
    %v2082 = vadd.f32 %v2080, %v2081
    %v2083 = vrot.slane %v2082, 1
    %v2084 = vadd.f32 %v2082, %v2083
    %v2085 = vrot.slane %v1783, 4
    %v2086 = vadd.f32 %v1783, %v2085
    %v2087 = vrot.slane %v2086, 2
    %v2088 = vadd.f32 %v2086, %v2087
    %v2089 = vrot.slane %v2088, 1
    %v2090 = vadd.f32 %v2088, %v2089
    %v2091 = vrot.slane %v1785, 4
    %v2092 = vadd.f32 %v1785, %v2091
    %v2093 = vrot.slane %v2092, 2
    %v2094 = vadd.f32 %v2092, %v2093
    %v2095 = vrot.slane %v2094, 1
    %v2096 = vadd.f32 %v2094, %v2095
    %v2097 = vrot.slane %v1925, 4
    %v2098 = vadd.f32 %v1925, %v2097
    %v2099 = vrot.slane %v2098, 2
    %v2100 = vadd.f32 %v2098, %v2099
    %v2101 = vrot.slane %v2100, 1
    %v2102 = vadd.f32 %v2100, %v2101
    %v2103 = vrot.slane %v1927, 4
    %v2104 = vadd.f32 %v1927, %v2103
    %v2105 = vrot.slane %v2104, 2
    %v2106 = vadd.f32 %v2104, %v2105
    %v2107 = vrot.slane %v2106, 1
    %v2108 = vadd.f32 %v2106, %v2107
    %v2109 = vrot.slane %v2067, 4
    %v2110 = vadd.f32 %v2067, %v2109
    %v2111 = vrot.slane %v2110, 2
    %v2112 = vadd.f32 %v2110, %v2111
    %v2113 = vrot.slane %v2112, 1
    %v2114 = vadd.f32 %v2112, %v2113
    %v2115 = vrot.slane %v2069, 4
    %v2116 = vadd.f32 %v2069, %v2115
    %v2117 = vrot.slane %v2116, 2
    %v2118 = vadd.f32 %v2116, %v2117
    %v2119 = vrot.slane %v2118, 1
    %v2120 = vadd.f32 %v2118, %v2119
    %v2121 = vmul.f32 %v2078, %v458
    %v2122 = vmul.f32 %v2084, %v458
    %v2123 = vmul.f32 %v2090, %v458
    %v2124 = vmul.f32 %v2096, %v458
    %v2125 = vmul.f32 %v2102, %v458
    %v2126 = vmul.f32 %v2108, %v458
    %v2127 = vmul.f32 %v2114, %v458
    %v2128 = vmul.f32 %v2120, %v458
    %v2129 = vsub.f32 %v1641, %v2121
    %v2130 = vsub.f32 %v1643, %v2122
    %v2131 = vsub.f32 %v1783, %v2123
    %v2132 = vsub.f32 %v1785, %v2124
    %v2133 = vsub.f32 %v1925, %v2125
    %v2134 = vsub.f32 %v1927, %v2126
    %v2135 = vsub.f32 %v2067, %v2127
    %v2136 = vsub.f32 %v2069, %v2128
    %v2137 = vmul.f32 %v2129, %v2129
    %v2138 = vmul.f32 %v2130, %v2130
    %v2139 = vmul.f32 %v2131, %v2131
    %v2140 = vmul.f32 %v2132, %v2132
    %v2141 = vmul.f32 %v2133, %v2133
    %v2142 = vmul.f32 %v2134, %v2134
    %v2143 = vmul.f32 %v2135, %v2135
    %v2144 = vmul.f32 %v2136, %v2136
    %v2145 = vrot.slane %v2137, 4
    %v2146 = vadd.f32 %v2137, %v2145
    %v2147 = vrot.slane %v2146, 2
    %v2148 = vadd.f32 %v2146, %v2147
    %v2149 = vrot.slane %v2148, 1
    %v2150 = vadd.f32 %v2148, %v2149
    %v2151 = vrot.slane %v2138, 4
    %v2152 = vadd.f32 %v2138, %v2151
    %v2153 = vrot.slane %v2152, 2
    %v2154 = vadd.f32 %v2152, %v2153
    %v2155 = vrot.slane %v2154, 1
    %v2156 = vadd.f32 %v2154, %v2155
    %v2157 = vrot.slane %v2139, 4
    %v2158 = vadd.f32 %v2139, %v2157
    %v2159 = vrot.slane %v2158, 2
    %v2160 = vadd.f32 %v2158, %v2159
    %v2161 = vrot.slane %v2160, 1
    %v2162 = vadd.f32 %v2160, %v2161
    %v2163 = vrot.slane %v2140, 4
    %v2164 = vadd.f32 %v2140, %v2163
    %v2165 = vrot.slane %v2164, 2
    %v2166 = vadd.f32 %v2164, %v2165
    %v2167 = vrot.slane %v2166, 1
    %v2168 = vadd.f32 %v2166, %v2167
    %v2169 = vrot.slane %v2141, 4
    %v2170 = vadd.f32 %v2141, %v2169
    %v2171 = vrot.slane %v2170, 2
    %v2172 = vadd.f32 %v2170, %v2171
    %v2173 = vrot.slane %v2172, 1
    %v2174 = vadd.f32 %v2172, %v2173
    %v2175 = vrot.slane %v2142, 4
    %v2176 = vadd.f32 %v2142, %v2175
    %v2177 = vrot.slane %v2176, 2
    %v2178 = vadd.f32 %v2176, %v2177
    %v2179 = vrot.slane %v2178, 1
    %v2180 = vadd.f32 %v2178, %v2179
    %v2181 = vrot.slane %v2143, 4
    %v2182 = vadd.f32 %v2143, %v2181
    %v2183 = vrot.slane %v2182, 2
    %v2184 = vadd.f32 %v2182, %v2183
    %v2185 = vrot.slane %v2184, 1
    %v2186 = vadd.f32 %v2184, %v2185
    %v2187 = vrot.slane %v2144, 4
    %v2188 = vadd.f32 %v2144, %v2187
    %v2189 = vrot.slane %v2188, 2
    %v2190 = vadd.f32 %v2188, %v2189
    %v2191 = vrot.slane %v2190, 1
    %v2192 = vadd.f32 %v2190, %v2191
    %v2193 = vmul.f32 %v2150, %v458
    %v2194 = vmul.f32 %v2156, %v458
    %v2195 = vmul.f32 %v2162, %v458
    %v2196 = vmul.f32 %v2168, %v458
    %v2197 = vmul.f32 %v2174, %v458
    %v2198 = vmul.f32 %v2180, %v458
    %v2199 = vmul.f32 %v2186, %v458
    %v2200 = vmul.f32 %v2192, %v458
    %v2202 = vlaneseq
    %v2203 = vshrl.u32 %v2202, 7
    %v2204 = vsub.s32 0, %v2203
    %v2205 = vrot.slane %v2071, %v2204
    %v2206 = vlaneseq
    %v2207 = vshrl.u32 %v2206, 7
    %v2208 = vsub.s32 1, %v2207
    %v2209 = vrot.slane %v2071, %v2208
    %v2210 = vlaneseq
    %v2211 = vshrl.u32 %v2210, 7
    %v2212 = vsub.s32 2, %v2211
    %v2213 = vrot.slane %v2071, %v2212
    %v2214 = vlaneseq
    %v2215 = vshrl.u32 %v2214, 7
    %v2216 = vsub.s32 3, %v2215
    %v2217 = vrot.slane %v2071, %v2216
    %v2218 = vlaneseq
    %v2219 = vshrl.u32 %v2218, 7
    %v2220 = vsub.s32 4, %v2219
    %v2221 = vrot.slane %v2071, %v2220
    %v2222 = vlaneseq
    %v2223 = vshrl.u32 %v2222, 7
    %v2224 = vsub.s32 5, %v2223
    %v2225 = vrot.slane %v2071, %v2224
    %v2226 = vlaneseq
    %v2227 = vshrl.u32 %v2226, 7
    %v2228 = vsub.s32 6, %v2227
    %v2229 = vrot.slane %v2071, %v2228
    %v2230 = vlaneseq
    %v2231 = vshrl.u32 %v2230, 7
    %v2232 = vsub.s32 7, %v2231
    %v2233 = vrot.slane %v2071, %v2232
    %v2242 = vmul.f32 %v2205, %v2129
    %v2243 = vmul.f32 %v2209, %v2130
    %v2244 = vmul.f32 %v2213, %v2131
    %v2245 = vmul.f32 %v2217, %v2132
    %v2246 = vmul.f32 %v2221, %v2133
    %v2247 = vmul.f32 %v2225, %v2134
    %v2248 = vmul.f32 %v2229, %v2135
    %v2249 = vmul.f32 %v2233, %v2136
    %v2250 = vadd.f32 %v2193, 0.9
    %v2251 = vadd.f32 %v2194, 0.9
    %v2252 = vadd.f32 %v2195, 0.9
    %v2253 = vadd.f32 %v2196, 0.9
    %v2254 = vadd.f32 %v2197, 0.9
    %v2255 = vadd.f32 %v2198, 0.9
    %v2256 = vadd.f32 %v2199, 0.9
    %v2257 = vadd.f32 %v2200, 0.9
    %v2258 = vrsqrt.pop %v2250
    %v2259 = vrsqrt.pop %v2251
    %v2260 = vrsqrt.pop %v2252
    %v2261 = vrsqrt.pop %v2253
    %v2262 = vrsqrt.pop %v2254
    %v2263 = vrsqrt.pop %v2255
    %v2264 = vrsqrt.pop %v2256
    %v2265 = vrsqrt.pop %v2257
    %v2266 = vmul.f32 %v2242, %v2258
    %v2267 = vmul.f32 %v2243, %v2259
    %v2268 = vmul.f32 %v2244, %v2260
    %v2269 = vmul.f32 %v2245, %v2261
    %v2270 = vmul.f32 %v2246, %v2262
    %v2271 = vmul.f32 %v2247, %v2263
    %v2272 = vmul.f32 %v2248, %v2264
    %v2273 = vmul.f32 %v2249, %v2265
    %v2275 = vlaneseq
    %v2276 = vshrl.u32 %v2275, 7
    %v2277 = vsub.s32 0, %v2276
    %v2278 = vrot.slane %v2072, %v2277
    %v2279 = vlaneseq
    %v2280 = vshrl.u32 %v2279, 7
    %v2281 = vsub.s32 1, %v2280
    %v2282 = vrot.slane %v2072, %v2281
    %v2283 = vlaneseq
    %v2284 = vshrl.u32 %v2283, 7
    %v2285 = vsub.s32 2, %v2284
    %v2286 = vrot.slane %v2072, %v2285
    %v2287 = vlaneseq
    %v2288 = vshrl.u32 %v2287, 7
    %v2289 = vsub.s32 3, %v2288
    %v2290 = vrot.slane %v2072, %v2289
    %v2291 = vlaneseq
    %v2292 = vshrl.u32 %v2291, 7
    %v2293 = vsub.s32 4, %v2292
    %v2294 = vrot.slane %v2072, %v2293
    %v2295 = vlaneseq
    %v2296 = vshrl.u32 %v2295, 7
    %v2297 = vsub.s32 5, %v2296
    %v2298 = vrot.slane %v2072, %v2297
    %v2299 = vlaneseq
    %v2300 = vshrl.u32 %v2299, 7
    %v2301 = vsub.s32 6, %v2300
    %v2302 = vrot.slane %v2072, %v2301
    %v2303 = vlaneseq
    %v2304 = vshrl.u32 %v2303, 7
    %v2305 = vsub.s32 7, %v2304
    %v2306 = vrot.slane %v2072, %v2305
    %v2315 = vadd.f32 %v2266, %v2278
    %v2316 = vadd.f32 %v2267, %v2282
    %v2317 = vadd.f32 %v2268, %v2286
    %v2318 = vadd.f32 %v2269, %v2290
    %v2319 = vadd.f32 %v2270, %v2294
    %v2320 = vadd.f32 %v2271, %v2298
    %v2321 = vadd.f32 %v2272, %v2302
    %v2322 = vadd.f32 %v2273, %v2306
    %vm2323 = vcmp.ge.f32.partialorder %v2315, 0.0
    %vm2324 = vcmp.ge.f32.partialorder %v2316, 0.0
    %vm2325 = vcmp.ge.f32.partialorder %v2317, 0.0
    %vm2326 = vcmp.ge.f32.partialorder %v2318, 0.0
    %vm2327 = vcmp.ge.f32.partialorder %v2319, 0.0
    %vm2328 = vcmp.ge.f32.partialorder %v2320, 0.0
    %vm2329 = vcmp.ge.f32.partialorder %v2321, 0.0
    %vm2330 = vcmp.ge.f32.partialorder %v2322, 0.0
    %v2331 = vmul.f32 %v2315, 0.2
    %v2332 = vmul.f32 %v2316, 0.2
    %v2333 = vmul.f32 %v2317, 0.2
    %v2334 = vmul.f32 %v2318, 0.2
    %v2335 = vmul.f32 %v2319, 0.2
    %v2336 = vmul.f32 %v2320, 0.2
    %v2337 = vmul.f32 %v2321, 0.2
    %v2338 = vmul.f32 %v2322, 0.2
    %v2339 = vsel %vm2323, %v2315, %v2331
    %v2340 = vsel %vm2324, %v2316, %v2332
    %v2341 = vsel %vm2325, %v2317, %v2333
    %v2342 = vsel %vm2326, %v2318, %v2334
    %v2343 = vsel %vm2327, %v2319, %v2335
    %v2344 = vsel %vm2328, %v2320, %v2336
    %v2345 = vsel %vm2329, %v2321, %v2337
    %v2346 = vsel %vm2330, %v2322, %v2338
    %v2347 = vpack.c.bf16 %v2339, %v2339
    %v2348 = vpack.c.bf16 %v2340, %v2340
    %v2349 = vpack.c.bf16 %v2341, %v2341
    %v2350 = vpack.c.bf16 %v2342, %v2342
    %v2351 = vpack.c.bf16 %v2343, %v2343
    %v2352 = vpack.c.bf16 %v2344, %v2344
    %v2353 = vpack.c.bf16 %v2345, %v2345
    %v2354 = vpack.c.bf16 %v2346, %v2346
    %v2363 = vunpack.c.l.b16 %v2347
    %v2364 = vunpack.c.l.b16 %v2348
    %v2365 = vunpack.c.l.b16 %v2349
    %v2366 = vunpack.c.l.b16 %v2350
    %v2367 = vunpack.c.l.b16 %v2351
    %v2368 = vunpack.c.l.b16 %v2352
    %v2369 = vunpack.c.l.b16 %v2353
    %v2370 = vunpack.c.l.b16 %v2354
    %v2371 = vpack.c.b16 %v2364, %v2363
    %v2372 = vpack.c.b16 %v2366, %v2365
    %v2373 = vpack.c.b16 %v2368, %v2367
    %v2374 = vpack.c.b16 %v2370, %v2369
    %2379 = vst [vmem:[#allocation26] sm:$0xff] %v2371
    %2380 = vst [vmem:[#allocation26 + $0x8] sm:$0xff] %v2372
    %2381 = vst [vmem:[#allocation26 + $0x10] sm:$0xff] %v2373
    %2382 = vst [vmem:[#allocation26 + $0x18] sm:$0xff] %v2374
    // Predicated region
    $region122: #{tpu_custom_call.1} parent=1 // pred_check
      _
    $region123: #{tpu_custom_call.1} parent=1 // pred_check_branch
      %2384 = sbr.rel (0) target = $region125
    $region124: #{tpu_custom_call.1} parent=1 // pred_region
      %s2386 = ssub.s32 512, 512
      %2387 = vsyncadd [#allocation4], %s2386
      %s2389 = sshll.u32 [#allocation26], 4
      %s2390 = int_to_ptr.vmem [resolvable:$true] %s2389
      %2392 = dma.vmem_to_hbm [thread:$0]  %s2390, 512, %s15, [#allocation4]
    $region125: #{tpu_custom_call.1} parent=1 // pred_fallthru
      _
    // Predicated region
    $region126: #{tpu_custom_call.1} parent=1 // pred_check
      _
    $region127: #{tpu_custom_call.1} parent=1 // pred_check_branch
      %2394 = sbr.rel (0) target = $region129
    $region128: #{tpu_custom_call.1} parent=1 // pred_region
      %2395 = dma.done [#allocation4], 512
    $region129: #{tpu_custom_call.1} parent=1 // pred_fallthru
      _
    %2396 = vsyncpa [#allocation3], 1
    %2397 = vsyncpa [#allocation6], 1
    %2398 = vsyncpa [#allocation9], 1
    %2399 = vsyncpa [#allocation12], 1
    %2400 = vsyncpa [#allocation15], 1
    %2401 = vsyncpa [#allocation18], 1
    %2402 = vsyncpa [#allocation21], 1
    %2403 = vsyncpa [#allocation24], 1
    %2404 = vsyncpa [#allocation4], 1

</llo_original>
